<compile_context>
chip_gen: v6e
topology: v6e:2x2x1
jax: 0.10.0
libtpu: 0.0.40
codegen_flags: <defaults>
</compile_context>

<pallas_src>
import functools

import jax
import jax.numpy as jnp
from jax import lax
from jax.experimental import pallas as pl
from jax.experimental.pallas import tpu as pltpu

_LANES = 128


def _round_up(x, m):
    return (x + m - 1) // m * m


def _projector_kernel(kinv_ref, k_ref, tsum_ref, depth_ref, mbits_ref,
                      idx_ref, z_ref, *, C, H, W, TH, WP, NW):
    b = pl.program_id(0)
    t = pl.program_id(1)
    eps = jnp.float32(1e-10)

    # Pixel coordinates of this (TH, WP) tile: plain 2-D iotas, no div/mod.
    row = lax.broadcasted_iota(jnp.int32, (TH, WP), 0)
    col = lax.broadcasted_iota(jnp.int32, (TH, WP), 1)
    v = (t * TH + row).astype(jnp.float32)
    u = col.astype(jnp.float32)

    d = depth_ref[...]                                    # (TH, WP) f32

    # points_3d = (K^-1 @ [u, v, 1]) * depth   (per-pixel 3x3 matvec, unrolled)
    def ki(i, j):
        return kinv_ref[b, 3 * i + j]

    px = (ki(0, 0) * u + ki(0, 1) * v + ki(0, 2)) * d
    py = (ki(1, 0) * u + ki(1, 1) * v + ki(1, 2)) * d
    pz = (ki(2, 0) * u + ki(2, 1) * v + ki(2, 2)) * d

    # Unpack the bit-packed masks once into full 32-bit vregs.
    bits = [mbits_ref[w].astype(jnp.int32) for w in range(NW)]

    # Per-class transform under its mask.  Later classes overwrite earlier
    # ones, always transforming the ORIGINAL points (matches the reference
    # python loop + boolean-index scatter).  Perspective divide is deferred.
    sx, sy, sz, sw = px, py, pz, jnp.ones_like(px)
    for c in range(C):
        def tt(i, j, _c=c):
            return tsum_ref[_c, 4 * i + j]

        qx = tt(0, 0) * px + tt(0, 1) * py + tt(0, 2) * pz + tt(0, 3)
        qy = tt(1, 0) * px + tt(1, 1) * py + tt(1, 2) * pz + tt(1, 3)
        qz = tt(2, 0) * px + tt(2, 1) * py + tt(2, 2) * pz + tt(2, 3)
        qw = tt(3, 0) * px + tt(3, 1) * py + tt(3, 2) * pz + tt(3, 3)
        m = ((bits[c // 32] >> (c % 32)) & 1) != 0
        sx = jnp.where(m, qx, sx)
        sy = jnp.where(m, qy, sy)
        sz = jnp.where(m, qz, sz)
        sw = jnp.where(m, qw, sw)

    # Single deferred perspective divide (exact: feeds the output depth).
    # For unmasked pixels sw == 1 and 1 + 1e-10 == 1 in f32, so they keep
    # their original points exactly, as in the reference.
    inv_w = pl.reciprocal(sw + eps)
    tx = sx * inv_w
    ty = sy * inv_w
    tz = sz * inv_w

    # Reproject: K @ transformed points, perspective divide, clamp + truncate.
    def kk(i, j):
        return k_ref[b, 3 * i + j]

    rx = kk(0, 0) * tx + kk(0, 1) * ty + kk(0, 2) * tz
    ry = kk(1, 0) * tx + kk(1, 1) * ty + kk(1, 2) * tz
    rz = kk(2, 0) * tx + kk(2, 1) * ty + kk(2, 2) * tz
    inv_rz = pl.reciprocal(rz + eps)    # exact: protects the truncated index
    u2 = rx * inv_rz
    v2 = ry * inv_rz

    # .clamp(0, dim-1).long(): nonnegative after clamp -> truncation == floor
    u_cl = jnp.clip(u2, 0.0, jnp.float32(W - 1)).astype(jnp.int32)
    v_cl = jnp.clip(v2, 0.0, jnp.float32(H - 1)).astype(jnp.int32)
    idx_ref[...] = v_cl * W + u_cl                        # single flat index
    z_ref[...] = tz


def projector_forward(depth, K, T, masks):
    """Pallas implementation of projector.forward(depth, K, T, masks)."""
    B, _, H, W = depth.shape
    C = masks.shape[1]
    N = H * W

    # Lane-dense padded plane.
    W_pad = _round_up(W, _LANES)

    # Row tile: multiple of 32 (8-bit sublane tiling), targeting ~128K px/step.
    target_rows = max(32, (131072 // W_pad) // 32 * 32)
    TH = min(_round_up(H, 32), target_rows)
    # Keep >= 2 parallel grid steps so both v7x TensorCores get work.
    if B * (_round_up(H, TH) // TH) < 2 and TH > 32:
        TH = max(32, _round_up((H + 1) // 2, 32))
    H_pad = _round_up(H, TH)
    n_tiles = H_pad // TH

    depth_f32 = depth.astype(jnp.float32)
    depth_pad = jnp.pad(depth_f32[:, 0],
                        ((0, 0), (0, H_pad - H), (0, W_pad - W)))

    # Bit-pack the C boolean masks: one uint8 plane (C<=8) or int32 words.
    masks_b = masks.astype(bool)
    if C <= 8:
        n_words = 1
        wgt = (jnp.int32(1) << jnp.arange(C, dtype=jnp.int32)
               )[None, :, None, None]
        mbits = jnp.sum(masks_b.astype(jnp.int32) * wgt, axis=1,
                        keepdims=True).astype(jnp.uint8)
        mask_bpp = 1
    else:
        n_words = (C + 31) // 32
        planes = []
        for wi in range(n_words):
            lo, hi = wi * 32, min(C, (wi + 1) * 32)
            cs = jnp.arange(lo, hi, dtype=jnp.uint32)
            wgt = (jnp.uint32(1) << (cs % jnp.uint32(32))
                   )[None, :, None, None]
            planes.append(jnp.sum(masks_b[:, lo:hi].astype(jnp.uint32) * wgt,
                                  axis=1))
        mbits = lax.bitcast_convert_type(jnp.stack(planes, axis=1), jnp.int32)
        mask_bpp = 4 * n_words
    mbits = jnp.pad(mbits, ((0, 0), (0, 0), (0, H_pad - H), (0, W_pad - W)))

    K = K.astype(jnp.float32)
    k_inv_flat = jnp.linalg.inv(K).reshape(B, 9)          # glue: 3x3 inverse
    k_flat = K.reshape(B, 9)
    # NOTE: the reference einsum('bij,nj->ni', T[:, c], pts) also sums over
    # the batch axis of T, so the effective per-class transform is the
    # batch-sum of T.  Reproduce that exactly by pre-summing.
    t_sum_flat = T.astype(jnp.float32).sum(axis=0).reshape(C, 16)

    kernel = functools.partial(_projector_kernel, C=C, H=H, W=W,
                               TH=TH, WP=W_pad, NW=n_words)

    # VMEM limit sized to the double-buffered per-step working set + headroom.
    block_bytes = TH * W_pad * (4 + 4 + 4 + mask_bpp)
    vmem_limit = int(min(64 * 2**20, max(8 * 2**20, 3 * block_bytes)))

    flat_idx, z = pl.pallas_call(
        kernel,
        grid=(B, n_tiles),
        in_specs=[
            pl.BlockSpec(memory_space=pltpu.MemorySpace.SMEM),  # K^-1 (B, 9)
            pl.BlockSpec(memory_space=pltpu.MemorySpace.SMEM),  # K    (B, 9)
            pl.BlockSpec(memory_space=pltpu.MemorySpace.SMEM),  # Tsum (C, 16)
            pl.BlockSpec((None, TH, W_pad), lambda b, t: (b, t, 0)),
            pl.BlockSpec((None, n_words, TH, W_pad),
                         lambda b, t: (b, 0, t, 0)),
        ],
        out_specs=[
            pl.BlockSpec((None, TH, W_pad), lambda b, t: (b, t, 0)),
            pl.BlockSpec((None, TH, W_pad), lambda b, t: (b, t, 0)),
        ],
        out_shape=[
            jax.ShapeDtypeStruct((B, H_pad, W_pad), jnp.int32),
            jax.ShapeDtypeStruct((B, H_pad, W_pad), jnp.float32),
        ],
        compiler_params=pltpu.CompilerParams(
            dimension_semantics=("parallel", "parallel"),
            vmem_limit_bytes=vmem_limit),
    )(k_inv_flat, k_flat, t_sum_flat, depth_pad, mbits)

    flat_idx = flat_idx[:, :H, :W].reshape(B, N)
    zz = z[:, :H, :W].reshape(B, N)

    # TODO(synk): the data-dependent scatter depth_map[B_idx, :, v, u] = Z has
    # no clean Pallas-TPU equivalent; done here with an XLA scatter.  Indices
    # are already clamped in-kernel, so promise_in_bounds skips the bounds
    # path.  Duplicate targets resolve in unspecified order, same as the
    # PyTorch reference.
    dm = depth_f32.reshape(B, N)
    dm = jax.vmap(
        lambda d, i, zv: d.at[i].set(zv, mode="promise_in_bounds"))(
            dm, flat_idx, zz)
    return dm.reshape(B, 1, H, W)


if __name__ == "__main__":
    B, C, H, W = 2, 3, 16, 16
    key = jax.random.PRNGKey(0)
    k1, k2, k3 = jax.random.split(key, 3)

    depth = jax.random.uniform(k1, (B, 1, H, W), jnp.float32, 1.0, 5.0)

    fx, fy = 20.0, 20.0
    cx, cy = (W - 1) / 2.0, (H - 1) / 2.0
    K = jnp.broadcast_to(
        jnp.array([[fx, 0.0, cx], [0.0, fy, cy], [0.0, 0.0, 1.0]],
                  dtype=jnp.float32), (B, 3, 3))

    # small perturbations of the identity as homogeneous transforms
    T = (jnp.broadcast_to(jnp.eye(4, dtype=jnp.float32), (B, C, 4, 4))
         + 0.05 * jax.random.normal(k2, (B, C, 4, 4), jnp.float32))

    masks = jax.random.bernoulli(k3, 0.3, (B, C, H, W))

    out = projector_forward(depth, K, T, masks)
    jax.block_until_ready(out)
    assert out.shape == (B, 1, H, W) and out.dtype == jnp.float32
    assert bool(jnp.all(jnp.isfinite(out)))
    print("KERNEL_OK")
</pallas_src>

<mosaic_0001>
module attributes {stable_mosaic.version = 11 : i64} {
  func.func @_projector_kernel(%arg0: i32, %arg1: i32, %arg2: memref<2x9xf32, #tpu.memory_space<smem>>, %arg3: memref<2x9xf32, #tpu.memory_space<smem>>, %arg4: memref<3x16xf32, #tpu.memory_space<smem>>, %arg5: memref<1x32x128xf32, #tpu.memory_space<vmem>>, %arg6: memref<1x1x32x128xi8, #tpu.memory_space<vmem>>, %arg7: memref<1x32x128xi32, #tpu.memory_space<vmem>>, %arg8: memref<1x32x128xf32, #tpu.memory_space<vmem>>) attributes {dimension_semantics = [#tpu.dimension_semantics<parallel>, #tpu.dimension_semantics<parallel>], iteration_bounds = array<i64: 2, 1>, scalar_prefetch = 0 : i64, scratch_operands = 0 : i64, tpu.core_type = #tpu.core_type<tc>, window_params = [{transform_indices = @transform_0, window_bounds = array<i64: 2, 9>}, {transform_indices = @transform_1, window_bounds = array<i64: 2, 9>}, {transform_indices = @transform_2, window_bounds = array<i64: 3, 16>}, {transform_indices = @transform_3, window_bounds = array<i64: 1, 32, 128>}, {transform_indices = @transform_4, window_bounds = array<i64: 1, 1, 32, 128>}, {transform_indices = @transform_5, window_bounds = array<i64: 1, 32, 128>}, {transform_indices = @transform_6, window_bounds = array<i64: 1, 32, 128>}]} {
    %0 = tpu.iota {dimensions = array<i32: 0>} : vector<32x128xi32>
    %1 = tpu.iota {dimensions = array<i32: 1>} : vector<32x128xi32>
    %c32_i32 = arith.constant 32 : i32
    %2 = arith.muli %arg1, %c32_i32 : i32
    %3 = vector.broadcast %2 : i32 to vector<32x128xi32>
    %4 = arith.addi %3, %0 : vector<32x128xi32>
    %5 = arith.sitofp %4 : vector<32x128xi32> to vector<32x128xf32>
    %6 = arith.sitofp %1 : vector<32x128xi32> to vector<32x128xf32>
    %c0 = arith.constant 0 : index
    %c0_0 = arith.constant 0 : index
    %c0_1 = arith.constant 0 : index
    %7 = vector.load %arg5[%c0, %c0_0, %c0_1] : memref<1x32x128xf32, #tpu.memory_space<vmem>>, vector<1x32x128xf32>
    %8 = vector.shape_cast %7 : vector<1x32x128xf32> to vector<32x128xf32>
    %9 = arith.index_cast %arg0 : i32 to index
    %c0_2 = arith.constant 0 : index
    %10 = memref.load %arg2[%9, %c0_2] : memref<2x9xf32, #tpu.memory_space<smem>>
    %11 = vector.broadcast %10 : f32 to vector<32x128xf32>
    %12 = arith.mulf %11, %6 : vector<32x128xf32>
    %13 = arith.index_cast %arg0 : i32 to index
    %c1 = arith.constant 1 : index
    %14 = memref.load %arg2[%13, %c1] : memref<2x9xf32, #tpu.memory_space<smem>>
    %15 = vector.broadcast %14 : f32 to vector<32x128xf32>
    %16 = arith.mulf %15, %5 : vector<32x128xf32>
    %17 = arith.addf %12, %16 : vector<32x128xf32>
    %18 = arith.index_cast %arg0 : i32 to index
    %c2 = arith.constant 2 : index
    %19 = memref.load %arg2[%18, %c2] : memref<2x9xf32, #tpu.memory_space<smem>>
    %20 = vector.broadcast %19 : f32 to vector<32x128xf32>
    %21 = arith.addf %17, %20 : vector<32x128xf32>
    %22 = arith.mulf %21, %8 : vector<32x128xf32>
    %23 = arith.index_cast %arg0 : i32 to index
    %c3 = arith.constant 3 : index
    %24 = memref.load %arg2[%23, %c3] : memref<2x9xf32, #tpu.memory_space<smem>>
    %25 = vector.broadcast %24 : f32 to vector<32x128xf32>
    %26 = arith.mulf %25, %6 : vector<32x128xf32>
    %27 = arith.index_cast %arg0 : i32 to index
    %c4 = arith.constant 4 : index
    %28 = memref.load %arg2[%27, %c4] : memref<2x9xf32, #tpu.memory_space<smem>>
    %29 = vector.broadcast %28 : f32 to vector<32x128xf32>
    %30 = arith.mulf %29, %5 : vector<32x128xf32>
    %31 = arith.addf %26, %30 : vector<32x128xf32>
    %32 = arith.index_cast %arg0 : i32 to index
    %c5 = arith.constant 5 : index
    %33 = memref.load %arg2[%32, %c5] : memref<2x9xf32, #tpu.memory_space<smem>>
    %34 = vector.broadcast %33 : f32 to vector<32x128xf32>
    %35 = arith.addf %31, %34 : vector<32x128xf32>
    %36 = arith.mulf %35, %8 : vector<32x128xf32>
    %37 = arith.index_cast %arg0 : i32 to index
    %c6 = arith.constant 6 : index
    %38 = memref.load %arg2[%37, %c6] : memref<2x9xf32, #tpu.memory_space<smem>>
    %39 = vector.broadcast %38 : f32 to vector<32x128xf32>
    %40 = arith.mulf %39, %6 : vector<32x128xf32>
    %41 = arith.index_cast %arg0 : i32 to index
    %c7 = arith.constant 7 : index
    %42 = memref.load %arg2[%41, %c7] : memref<2x9xf32, #tpu.memory_space<smem>>
    %43 = vector.broadcast %42 : f32 to vector<32x128xf32>
    %44 = arith.mulf %43, %5 : vector<32x128xf32>
    %45 = arith.addf %40, %44 : vector<32x128xf32>
    %46 = arith.index_cast %arg0 : i32 to index
    %c8 = arith.constant 8 : index
    %47 = memref.load %arg2[%46, %c8] : memref<2x9xf32, #tpu.memory_space<smem>>
    %48 = vector.broadcast %47 : f32 to vector<32x128xf32>
    %49 = arith.addf %45, %48 : vector<32x128xf32>
    %50 = arith.mulf %49, %8 : vector<32x128xf32>
    %c0_3 = arith.constant 0 : index
    %c0_4 = arith.constant 0 : index
    %c0_5 = arith.constant 0 : index
    %c0_6 = arith.constant 0 : index
    %51 = vector.load %arg6[%c0_3, %c0_4, %c0_5, %c0_6] : memref<1x1x32x128xi8, #tpu.memory_space<vmem>>, vector<1x1x32x128xi8>
    %52 = vector.shape_cast %51 : vector<1x1x32x128xi8> to vector<32x128xi8>
    %53 = arith.extui %52 : vector<32x128xi8> to vector<32x128xi32>
    %cst = arith.constant 1.000000e+00 : f32
    %54 = vector.broadcast %cst : f32 to vector<32x128xf32>
    %c0_7 = arith.constant 0 : index
    %c0_8 = arith.constant 0 : index
    %55 = memref.load %arg4[%c0_7, %c0_8] : memref<3x16xf32, #tpu.memory_space<smem>>
    %56 = vector.broadcast %55 : f32 to vector<32x128xf32>
    %57 = arith.mulf %56, %22 : vector<32x128xf32>
    %c0_9 = arith.constant 0 : index
    %c1_10 = arith.constant 1 : index
    %58 = memref.load %arg4[%c0_9, %c1_10] : memref<3x16xf32, #tpu.memory_space<smem>>
    %59 = vector.broadcast %58 : f32 to vector<32x128xf32>
    %60 = arith.mulf %59, %36 : vector<32x128xf32>
    %61 = arith.addf %57, %60 : vector<32x128xf32>
    %c0_11 = arith.constant 0 : index
    %c2_12 = arith.constant 2 : index
    %62 = memref.load %arg4[%c0_11, %c2_12] : memref<3x16xf32, #tpu.memory_space<smem>>
    %63 = vector.broadcast %62 : f32 to vector<32x128xf32>
    %64 = arith.mulf %63, %50 : vector<32x128xf32>
    %65 = arith.addf %61, %64 : vector<32x128xf32>
    %c0_13 = arith.constant 0 : index
    %c3_14 = arith.constant 3 : index
    %66 = memref.load %arg4[%c0_13, %c3_14] : memref<3x16xf32, #tpu.memory_space<smem>>
    %67 = vector.broadcast %66 : f32 to vector<32x128xf32>
    %68 = arith.addf %65, %67 : vector<32x128xf32>
    %c0_15 = arith.constant 0 : index
    %c4_16 = arith.constant 4 : index
    %69 = memref.load %arg4[%c0_15, %c4_16] : memref<3x16xf32, #tpu.memory_space<smem>>
    %70 = vector.broadcast %69 : f32 to vector<32x128xf32>
    %71 = arith.mulf %70, %22 : vector<32x128xf32>
    %c0_17 = arith.constant 0 : index
    %c5_18 = arith.constant 5 : index
    %72 = memref.load %arg4[%c0_17, %c5_18] : memref<3x16xf32, #tpu.memory_space<smem>>
    %73 = vector.broadcast %72 : f32 to vector<32x128xf32>
    %74 = arith.mulf %73, %36 : vector<32x128xf32>
    %75 = arith.addf %71, %74 : vector<32x128xf32>
    %c0_19 = arith.constant 0 : index
    %c6_20 = arith.constant 6 : index
    %76 = memref.load %arg4[%c0_19, %c6_20] : memref<3x16xf32, #tpu.memory_space<smem>>
    %77 = vector.broadcast %76 : f32 to vector<32x128xf32>
    %78 = arith.mulf %77, %50 : vector<32x128xf32>
    %79 = arith.addf %75, %78 : vector<32x128xf32>
    %c0_21 = arith.constant 0 : index
    %c7_22 = arith.constant 7 : index
    %80 = memref.load %arg4[%c0_21, %c7_22] : memref<3x16xf32, #tpu.memory_space<smem>>
    %81 = vector.broadcast %80 : f32 to vector<32x128xf32>
    %82 = arith.addf %79, %81 : vector<32x128xf32>
    %c0_23 = arith.constant 0 : index
    %c8_24 = arith.constant 8 : index
    %83 = memref.load %arg4[%c0_23, %c8_24] : memref<3x16xf32, #tpu.memory_space<smem>>
    %84 = vector.broadcast %83 : f32 to vector<32x128xf32>
    %85 = arith.mulf %84, %22 : vector<32x128xf32>
    %c0_25 = arith.constant 0 : index
    %c9 = arith.constant 9 : index
    %86 = memref.load %arg4[%c0_25, %c9] : memref<3x16xf32, #tpu.memory_space<smem>>
    %87 = vector.broadcast %86 : f32 to vector<32x128xf32>
    %88 = arith.mulf %87, %36 : vector<32x128xf32>
    %89 = arith.addf %85, %88 : vector<32x128xf32>
    %c0_26 = arith.constant 0 : index
    %c10 = arith.constant 10 : index
    %90 = memref.load %arg4[%c0_26, %c10] : memref<3x16xf32, #tpu.memory_space<smem>>
    %91 = vector.broadcast %90 : f32 to vector<32x128xf32>
    %92 = arith.mulf %91, %50 : vector<32x128xf32>
    %93 = arith.addf %89, %92 : vector<32x128xf32>
    %c0_27 = arith.constant 0 : index
    %c11 = arith.constant 11 : index
    %94 = memref.load %arg4[%c0_27, %c11] : memref<3x16xf32, #tpu.memory_space<smem>>
    %95 = vector.broadcast %94 : f32 to vector<32x128xf32>
    %96 = arith.addf %93, %95 : vector<32x128xf32>
    %c0_28 = arith.constant 0 : index
    %c12 = arith.constant 12 : index
    %97 = memref.load %arg4[%c0_28, %c12] : memref<3x16xf32, #tpu.memory_space<smem>>
    %98 = vector.broadcast %97 : f32 to vector<32x128xf32>
    %99 = arith.mulf %98, %22 : vector<32x128xf32>
    %c0_29 = arith.constant 0 : index
    %c13 = arith.constant 13 : index
    %100 = memref.load %arg4[%c0_29, %c13] : memref<3x16xf32, #tpu.memory_space<smem>>
    %101 = vector.broadcast %100 : f32 to vector<32x128xf32>
    %102 = arith.mulf %101, %36 : vector<32x128xf32>
    %103 = arith.addf %99, %102 : vector<32x128xf32>
    %c0_30 = arith.constant 0 : index
    %c14 = arith.constant 14 : index
    %104 = memref.load %arg4[%c0_30, %c14] : memref<3x16xf32, #tpu.memory_space<smem>>
    %105 = vector.broadcast %104 : f32 to vector<32x128xf32>
    %106 = arith.mulf %105, %50 : vector<32x128xf32>
    %107 = arith.addf %103, %106 : vector<32x128xf32>
    %c0_31 = arith.constant 0 : index
    %c15 = arith.constant 15 : index
    %108 = memref.load %arg4[%c0_31, %c15] : memref<3x16xf32, #tpu.memory_space<smem>>
    %109 = vector.broadcast %108 : f32 to vector<32x128xf32>
    %110 = arith.addf %107, %109 : vector<32x128xf32>
    %c0_i32 = arith.constant 0 : i32
    %111 = vector.broadcast %c0_i32 : i32 to vector<32x128xi32>
    %112 = arith.shrsi %53, %111 : vector<32x128xi32>
    %c1_i32 = arith.constant 1 : i32
    %113 = vector.broadcast %c1_i32 : i32 to vector<32x128xi32>
    %114 = arith.andi %112, %113 : vector<32x128xi32>
    %c0_i32_32 = arith.constant 0 : i32
    %115 = vector.broadcast %c0_i32_32 : i32 to vector<32x128xi32>
    %116 = arith.cmpi ne, %114, %115 : vector<32x128xi32>
    %117 = arith.select %116, %68, %22 : vector<32x128xi1>, vector<32x128xf32>
    %118 = arith.select %116, %82, %36 : vector<32x128xi1>, vector<32x128xf32>
    %119 = arith.select %116, %96, %50 : vector<32x128xi1>, vector<32x128xf32>
    %120 = arith.select %116, %110, %54 : vector<32x128xi1>, vector<32x128xf32>
    %c1_33 = arith.constant 1 : index
    %c0_34 = arith.constant 0 : index
    %121 = memref.load %arg4[%c1_33, %c0_34] : memref<3x16xf32, #tpu.memory_space<smem>>
    %122 = vector.broadcast %121 : f32 to vector<32x128xf32>
    %123 = arith.mulf %122, %22 : vector<32x128xf32>
    %c1_35 = arith.constant 1 : index
    %c1_36 = arith.constant 1 : index
    %124 = memref.load %arg4[%c1_35, %c1_36] : memref<3x16xf32, #tpu.memory_space<smem>>
    %125 = vector.broadcast %124 : f32 to vector<32x128xf32>
    %126 = arith.mulf %125, %36 : vector<32x128xf32>
    %127 = arith.addf %123, %126 : vector<32x128xf32>
    %c1_37 = arith.constant 1 : index
    %c2_38 = arith.constant 2 : index
    %128 = memref.load %arg4[%c1_37, %c2_38] : memref<3x16xf32, #tpu.memory_space<smem>>
    %129 = vector.broadcast %128 : f32 to vector<32x128xf32>
    %130 = arith.mulf %129, %50 : vector<32x128xf32>
    %131 = arith.addf %127, %130 : vector<32x128xf32>
    %c1_39 = arith.constant 1 : index
    %c3_40 = arith.constant 3 : index
    %132 = memref.load %arg4[%c1_39, %c3_40] : memref<3x16xf32, #tpu.memory_space<smem>>
    %133 = vector.broadcast %132 : f32 to vector<32x128xf32>
    %134 = arith.addf %131, %133 : vector<32x128xf32>
    %c1_41 = arith.constant 1 : index
    %c4_42 = arith.constant 4 : index
    %135 = memref.load %arg4[%c1_41, %c4_42] : memref<3x16xf32, #tpu.memory_space<smem>>
    %136 = vector.broadcast %135 : f32 to vector<32x128xf32>
    %137 = arith.mulf %136, %22 : vector<32x128xf32>
    %c1_43 = arith.constant 1 : index
    %c5_44 = arith.constant 5 : index
    %138 = memref.load %arg4[%c1_43, %c5_44] : memref<3x16xf32, #tpu.memory_space<smem>>
    %139 = vector.broadcast %138 : f32 to vector<32x128xf32>
    %140 = arith.mulf %139, %36 : vector<32x128xf32>
    %141 = arith.addf %137, %140 : vector<32x128xf32>
    %c1_45 = arith.constant 1 : index
    %c6_46 = arith.constant 6 : index
    %142 = memref.load %arg4[%c1_45, %c6_46] : memref<3x16xf32, #tpu.memory_space<smem>>
    %143 = vector.broadcast %142 : f32 to vector<32x128xf32>
    %144 = arith.mulf %143, %50 : vector<32x128xf32>
    %145 = arith.addf %141, %144 : vector<32x128xf32>
    %c1_47 = arith.constant 1 : index
    %c7_48 = arith.constant 7 : index
    %146 = memref.load %arg4[%c1_47, %c7_48] : memref<3x16xf32, #tpu.memory_space<smem>>
    %147 = vector.broadcast %146 : f32 to vector<32x128xf32>
    %148 = arith.addf %145, %147 : vector<32x128xf32>
    %c1_49 = arith.constant 1 : index
    %c8_50 = arith.constant 8 : index
    %149 = memref.load %arg4[%c1_49, %c8_50] : memref<3x16xf32, #tpu.memory_space<smem>>
    %150 = vector.broadcast %149 : f32 to vector<32x128xf32>
    %151 = arith.mulf %150, %22 : vector<32x128xf32>
    %c1_51 = arith.constant 1 : index
    %c9_52 = arith.constant 9 : index
    %152 = memref.load %arg4[%c1_51, %c9_52] : memref<3x16xf32, #tpu.memory_space<smem>>
    %153 = vector.broadcast %152 : f32 to vector<32x128xf32>
    %154 = arith.mulf %153, %36 : vector<32x128xf32>
    %155 = arith.addf %151, %154 : vector<32x128xf32>
    %c1_53 = arith.constant 1 : index
    %c10_54 = arith.constant 10 : index
    %156 = memref.load %arg4[%c1_53, %c10_54] : memref<3x16xf32, #tpu.memory_space<smem>>
    %157 = vector.broadcast %156 : f32 to vector<32x128xf32>
    %158 = arith.mulf %157, %50 : vector<32x128xf32>
    %159 = arith.addf %155, %158 : vector<32x128xf32>
    %c1_55 = arith.constant 1 : index
    %c11_56 = arith.constant 11 : index
    %160 = memref.load %arg4[%c1_55, %c11_56] : memref<3x16xf32, #tpu.memory_space<smem>>
    %161 = vector.broadcast %160 : f32 to vector<32x128xf32>
    %162 = arith.addf %159, %161 : vector<32x128xf32>
    %c1_57 = arith.constant 1 : index
    %c12_58 = arith.constant 12 : index
    %163 = memref.load %arg4[%c1_57, %c12_58] : memref<3x16xf32, #tpu.memory_space<smem>>
    %164 = vector.broadcast %163 : f32 to vector<32x128xf32>
    %165 = arith.mulf %164, %22 : vector<32x128xf32>
    %c1_59 = arith.constant 1 : index
    %c13_60 = arith.constant 13 : index
    %166 = memref.load %arg4[%c1_59, %c13_60] : memref<3x16xf32, #tpu.memory_space<smem>>
    %167 = vector.broadcast %166 : f32 to vector<32x128xf32>
    %168 = arith.mulf %167, %36 : vector<32x128xf32>
    %169 = arith.addf %165, %168 : vector<32x128xf32>
    %c1_61 = arith.constant 1 : index
    %c14_62 = arith.constant 14 : index
    %170 = memref.load %arg4[%c1_61, %c14_62] : memref<3x16xf32, #tpu.memory_space<smem>>
    %171 = vector.broadcast %170 : f32 to vector<32x128xf32>
    %172 = arith.mulf %171, %50 : vector<32x128xf32>
    %173 = arith.addf %169, %172 : vector<32x128xf32>
    %c1_63 = arith.constant 1 : index
    %c15_64 = arith.constant 15 : index
    %174 = memref.load %arg4[%c1_63, %c15_64] : memref<3x16xf32, #tpu.memory_space<smem>>
    %175 = vector.broadcast %174 : f32 to vector<32x128xf32>
    %176 = arith.addf %173, %175 : vector<32x128xf32>
    %c1_i32_65 = arith.constant 1 : i32
    %177 = vector.broadcast %c1_i32_65 : i32 to vector<32x128xi32>
    %178 = arith.shrsi %53, %177 : vector<32x128xi32>
    %c1_i32_66 = arith.constant 1 : i32
    %179 = vector.broadcast %c1_i32_66 : i32 to vector<32x128xi32>
    %180 = arith.andi %178, %179 : vector<32x128xi32>
    %c0_i32_67 = arith.constant 0 : i32
    %181 = vector.broadcast %c0_i32_67 : i32 to vector<32x128xi32>
    %182 = arith.cmpi ne, %180, %181 : vector<32x128xi32>
    %183 = arith.select %182, %134, %117 : vector<32x128xi1>, vector<32x128xf32>
    %184 = arith.select %182, %148, %118 : vector<32x128xi1>, vector<32x128xf32>
    %185 = arith.select %182, %162, %119 : vector<32x128xi1>, vector<32x128xf32>
    %186 = arith.select %182, %176, %120 : vector<32x128xi1>, vector<32x128xf32>
    %c2_68 = arith.constant 2 : index
    %c0_69 = arith.constant 0 : index
    %187 = memref.load %arg4[%c2_68, %c0_69] : memref<3x16xf32, #tpu.memory_space<smem>>
    %188 = vector.broadcast %187 : f32 to vector<32x128xf32>
    %189 = arith.mulf %188, %22 : vector<32x128xf32>
    %c2_70 = arith.constant 2 : index
    %c1_71 = arith.constant 1 : index
    %190 = memref.load %arg4[%c2_70, %c1_71] : memref<3x16xf32, #tpu.memory_space<smem>>
    %191 = vector.broadcast %190 : f32 to vector<32x128xf32>
    %192 = arith.mulf %191, %36 : vector<32x128xf32>
    %193 = arith.addf %189, %192 : vector<32x128xf32>
    %c2_72 = arith.constant 2 : index
    %c2_73 = arith.constant 2 : index
    %194 = memref.load %arg4[%c2_72, %c2_73] : memref<3x16xf32, #tpu.memory_space<smem>>
    %195 = vector.broadcast %194 : f32 to vector<32x128xf32>
    %196 = arith.mulf %195, %50 : vector<32x128xf32>
    %197 = arith.addf %193, %196 : vector<32x128xf32>
    %c2_74 = arith.constant 2 : index
    %c3_75 = arith.constant 3 : index
    %198 = memref.load %arg4[%c2_74, %c3_75] : memref<3x16xf32, #tpu.memory_space<smem>>
    %199 = vector.broadcast %198 : f32 to vector<32x128xf32>
    %200 = arith.addf %197, %199 : vector<32x128xf32>
    %c2_76 = arith.constant 2 : index
    %c4_77 = arith.constant 4 : index
    %201 = memref.load %arg4[%c2_76, %c4_77] : memref<3x16xf32, #tpu.memory_space<smem>>
    %202 = vector.broadcast %201 : f32 to vector<32x128xf32>
    %203 = arith.mulf %202, %22 : vector<32x128xf32>
    %c2_78 = arith.constant 2 : index
    %c5_79 = arith.constant 5 : index
    %204 = memref.load %arg4[%c2_78, %c5_79] : memref<3x16xf32, #tpu.memory_space<smem>>
    %205 = vector.broadcast %204 : f32 to vector<32x128xf32>
    %206 = arith.mulf %205, %36 : vector<32x128xf32>
    %207 = arith.addf %203, %206 : vector<32x128xf32>
    %c2_80 = arith.constant 2 : index
    %c6_81 = arith.constant 6 : index
    %208 = memref.load %arg4[%c2_80, %c6_81] : memref<3x16xf32, #tpu.memory_space<smem>>
    %209 = vector.broadcast %208 : f32 to vector<32x128xf32>
    %210 = arith.mulf %209, %50 : vector<32x128xf32>
    %211 = arith.addf %207, %210 : vector<32x128xf32>
    %c2_82 = arith.constant 2 : index
    %c7_83 = arith.constant 7 : index
    %212 = memref.load %arg4[%c2_82, %c7_83] : memref<3x16xf32, #tpu.memory_space<smem>>
    %213 = vector.broadcast %212 : f32 to vector<32x128xf32>
    %214 = arith.addf %211, %213 : vector<32x128xf32>
    %c2_84 = arith.constant 2 : index
    %c8_85 = arith.constant 8 : index
    %215 = memref.load %arg4[%c2_84, %c8_85] : memref<3x16xf32, #tpu.memory_space<smem>>
    %216 = vector.broadcast %215 : f32 to vector<32x128xf32>
    %217 = arith.mulf %216, %22 : vector<32x128xf32>
    %c2_86 = arith.constant 2 : index
    %c9_87 = arith.constant 9 : index
    %218 = memref.load %arg4[%c2_86, %c9_87] : memref<3x16xf32, #tpu.memory_space<smem>>
    %219 = vector.broadcast %218 : f32 to vector<32x128xf32>
    %220 = arith.mulf %219, %36 : vector<32x128xf32>
    %221 = arith.addf %217, %220 : vector<32x128xf32>
    %c2_88 = arith.constant 2 : index
    %c10_89 = arith.constant 10 : index
    %222 = memref.load %arg4[%c2_88, %c10_89] : memref<3x16xf32, #tpu.memory_space<smem>>
    %223 = vector.broadcast %222 : f32 to vector<32x128xf32>
    %224 = arith.mulf %223, %50 : vector<32x128xf32>
    %225 = arith.addf %221, %224 : vector<32x128xf32>
    %c2_90 = arith.constant 2 : index
    %c11_91 = arith.constant 11 : index
    %226 = memref.load %arg4[%c2_90, %c11_91] : memref<3x16xf32, #tpu.memory_space<smem>>
    %227 = vector.broadcast %226 : f32 to vector<32x128xf32>
    %228 = arith.addf %225, %227 : vector<32x128xf32>
    %c2_92 = arith.constant 2 : index
    %c12_93 = arith.constant 12 : index
    %229 = memref.load %arg4[%c2_92, %c12_93] : memref<3x16xf32, #tpu.memory_space<smem>>
    %230 = vector.broadcast %229 : f32 to vector<32x128xf32>
    %231 = arith.mulf %230, %22 : vector<32x128xf32>
    %c2_94 = arith.constant 2 : index
    %c13_95 = arith.constant 13 : index
    %232 = memref.load %arg4[%c2_94, %c13_95] : memref<3x16xf32, #tpu.memory_space<smem>>
    %233 = vector.broadcast %232 : f32 to vector<32x128xf32>
    %234 = arith.mulf %233, %36 : vector<32x128xf32>
    %235 = arith.addf %231, %234 : vector<32x128xf32>
    %c2_96 = arith.constant 2 : index
    %c14_97 = arith.constant 14 : index
    %236 = memref.load %arg4[%c2_96, %c14_97] : memref<3x16xf32, #tpu.memory_space<smem>>
    %237 = vector.broadcast %236 : f32 to vector<32x128xf32>
    %238 = arith.mulf %237, %50 : vector<32x128xf32>
    %239 = arith.addf %235, %238 : vector<32x128xf32>
    %c2_98 = arith.constant 2 : index
    %c15_99 = arith.constant 15 : index
    %240 = memref.load %arg4[%c2_98, %c15_99] : memref<3x16xf32, #tpu.memory_space<smem>>
    %241 = vector.broadcast %240 : f32 to vector<32x128xf32>
    %242 = arith.addf %239, %241 : vector<32x128xf32>
    %c2_i32 = arith.constant 2 : i32
    %243 = vector.broadcast %c2_i32 : i32 to vector<32x128xi32>
    %244 = arith.shrsi %53, %243 : vector<32x128xi32>
    %c1_i32_100 = arith.constant 1 : i32
    %245 = vector.broadcast %c1_i32_100 : i32 to vector<32x128xi32>
    %246 = arith.andi %244, %245 : vector<32x128xi32>
    %c0_i32_101 = arith.constant 0 : i32
    %247 = vector.broadcast %c0_i32_101 : i32 to vector<32x128xi32>
    %248 = arith.cmpi ne, %246, %247 : vector<32x128xi32>
    %249 = arith.select %248, %200, %183 : vector<32x128xi1>, vector<32x128xf32>
    %250 = arith.select %248, %214, %184 : vector<32x128xi1>, vector<32x128xf32>
    %251 = arith.select %248, %228, %185 : vector<32x128xi1>, vector<32x128xf32>
    %252 = arith.select %248, %242, %186 : vector<32x128xi1>, vector<32x128xf32>
    %cst_102 = arith.constant 1.000000e-10 : f32
    %253 = vector.broadcast %cst_102 : f32 to vector<32x128xf32>
    %254 = arith.addf %252, %253 : vector<32x128xf32>
    %255 = tpu.reciprocal %254 : vector<32x128xf32> -> vector<32x128xf32>
    %256 = arith.mulf %249, %255 : vector<32x128xf32>
    %257 = arith.mulf %250, %255 : vector<32x128xf32>
    %258 = arith.mulf %251, %255 : vector<32x128xf32>
    %259 = arith.index_cast %arg0 : i32 to index
    %c0_103 = arith.constant 0 : index
    %260 = memref.load %arg3[%259, %c0_103] : memref<2x9xf32, #tpu.memory_space<smem>>
    %261 = vector.broadcast %260 : f32 to vector<32x128xf32>
    %262 = arith.mulf %261, %256 : vector<32x128xf32>
    %263 = arith.index_cast %arg0 : i32 to index
    %c1_104 = arith.constant 1 : index
    %264 = memref.load %arg3[%263, %c1_104] : memref<2x9xf32, #tpu.memory_space<smem>>
    %265 = vector.broadcast %264 : f32 to vector<32x128xf32>
    %266 = arith.mulf %265, %257 : vector<32x128xf32>
    %267 = arith.addf %262, %266 : vector<32x128xf32>
    %268 = arith.index_cast %arg0 : i32 to index
    %c2_105 = arith.constant 2 : index
    %269 = memref.load %arg3[%268, %c2_105] : memref<2x9xf32, #tpu.memory_space<smem>>
    %270 = vector.broadcast %269 : f32 to vector<32x128xf32>
    %271 = arith.mulf %270, %258 : vector<32x128xf32>
    %272 = arith.addf %267, %271 : vector<32x128xf32>
    %273 = arith.index_cast %arg0 : i32 to index
    %c3_106 = arith.constant 3 : index
    %274 = memref.load %arg3[%273, %c3_106] : memref<2x9xf32, #tpu.memory_space<smem>>
    %275 = vector.broadcast %274 : f32 to vector<32x128xf32>
    %276 = arith.mulf %275, %256 : vector<32x128xf32>
    %277 = arith.index_cast %arg0 : i32 to index
    %c4_107 = arith.constant 4 : index
    %278 = memref.load %arg3[%277, %c4_107] : memref<2x9xf32, #tpu.memory_space<smem>>
    %279 = vector.broadcast %278 : f32 to vector<32x128xf32>
    %280 = arith.mulf %279, %257 : vector<32x128xf32>
    %281 = arith.addf %276, %280 : vector<32x128xf32>
    %282 = arith.index_cast %arg0 : i32 to index
    %c5_108 = arith.constant 5 : index
    %283 = memref.load %arg3[%282, %c5_108] : memref<2x9xf32, #tpu.memory_space<smem>>
    %284 = vector.broadcast %283 : f32 to vector<32x128xf32>
    %285 = arith.mulf %284, %258 : vector<32x128xf32>
    %286 = arith.addf %281, %285 : vector<32x128xf32>
    %287 = arith.index_cast %arg0 : i32 to index
    %c6_109 = arith.constant 6 : index
    %288 = memref.load %arg3[%287, %c6_109] : memref<2x9xf32, #tpu.memory_space<smem>>
    %289 = vector.broadcast %288 : f32 to vector<32x128xf32>
    %290 = arith.mulf %289, %256 : vector<32x128xf32>
    %291 = arith.index_cast %arg0 : i32 to index
    %c7_110 = arith.constant 7 : index
    %292 = memref.load %arg3[%291, %c7_110] : memref<2x9xf32, #tpu.memory_space<smem>>
    %293 = vector.broadcast %292 : f32 to vector<32x128xf32>
    %294 = arith.mulf %293, %257 : vector<32x128xf32>
    %295 = arith.addf %290, %294 : vector<32x128xf32>
    %296 = arith.index_cast %arg0 : i32 to index
    %c8_111 = arith.constant 8 : index
    %297 = memref.load %arg3[%296, %c8_111] : memref<2x9xf32, #tpu.memory_space<smem>>
    %298 = vector.broadcast %297 : f32 to vector<32x128xf32>
    %299 = arith.mulf %298, %258 : vector<32x128xf32>
    %300 = arith.addf %295, %299 : vector<32x128xf32>
    %cst_112 = arith.constant 1.000000e-10 : f32
    %301 = vector.broadcast %cst_112 : f32 to vector<32x128xf32>
    %302 = arith.addf %300, %301 : vector<32x128xf32>
    %303 = tpu.reciprocal %302 : vector<32x128xf32> -> vector<32x128xf32>
    %304 = arith.mulf %272, %303 : vector<32x128xf32>
    %305 = arith.mulf %286, %303 : vector<32x128xf32>
    %cst_113 = arith.constant 0.000000e+00 : f32
    %cst_114 = arith.constant 1.500000e+01 : f32
    %306 = vector.broadcast %cst_113 : f32 to vector<32x128xf32>
    %307 = arith.maximumf %306, %304 : vector<32x128xf32>
    %308 = vector.broadcast %cst_114 : f32 to vector<32x128xf32>
    %309 = arith.minimumf %308, %307 : vector<32x128xf32>
    %310 = arith.fptosi %309 : vector<32x128xf32> to vector<32x128xi32>
    %cst_115 = arith.constant 0.000000e+00 : f32
    %cst_116 = arith.constant 1.500000e+01 : f32
    %311 = vector.broadcast %cst_115 : f32 to vector<32x128xf32>
    %312 = arith.maximumf %311, %305 : vector<32x128xf32>
    %313 = vector.broadcast %cst_116 : f32 to vector<32x128xf32>
    %314 = arith.minimumf %313, %312 : vector<32x128xf32>
    %315 = arith.fptosi %314 : vector<32x128xf32> to vector<32x128xi32>
    %c16_i32 = arith.constant 16 : i32
    %316 = vector.broadcast %c16_i32 : i32 to vector<32x128xi32>
    %317 = arith.muli %315, %316 : vector<32x128xi32>
    %318 = arith.addi %317, %310 : vector<32x128xi32>
    %c0_117 = arith.constant 0 : index
    %c0_118 = arith.constant 0 : index
    %c0_119 = arith.constant 0 : index
    %319 = vector.load %arg7[%c0_117, %c0_118, %c0_119] : memref<1x32x128xi32, #tpu.memory_space<vmem>>, vector<1x32x128xi32>
    %320 = vector.shape_cast %319 : vector<1x32x128xi32> to vector<32x128xi32>
    %321 = vector.shape_cast %318 : vector<32x128xi32> to vector<1x32x128xi32>
    tpu.vector_store %arg7[%c0_117, %c0_118, %c0_119], %321 {strides = array<i32>} : memref<1x32x128xi32, #tpu.memory_space<vmem>>, vector<1x32x128xi32>,
    %c0_120 = arith.constant 0 : index
    %c0_121 = arith.constant 0 : index
    %c0_122 = arith.constant 0 : index
    %322 = vector.load %arg8[%c0_120, %c0_121, %c0_122] : memref<1x32x128xf32, #tpu.memory_space<vmem>>, vector<1x32x128xf32>
    %323 = vector.shape_cast %322 : vector<1x32x128xf32> to vector<32x128xf32>
    %324 = vector.shape_cast %258 : vector<32x128xf32> to vector<1x32x128xf32>
    tpu.vector_store %arg8[%c0_120, %c0_121, %c0_122], %324 {strides = array<i32>} : memref<1x32x128xf32, #tpu.memory_space<vmem>>, vector<1x32x128xf32>,
    return
  }
  func.func @transform_0(%arg0: i32, %arg1: i32) -> (i32, i32) {
    %c0_i32 = arith.constant 0 : i32
    %c0_i32_0 = arith.constant 0 : i32
    %c0_i32_1 = arith.constant 0 : i32
    return %c0_i32, %c0_i32_0 : i32, i32
  }
  func.func @transform_1(%arg0: i32, %arg1: i32) -> (i32, i32) {
    %c0_i32 = arith.constant 0 : i32
    %c0_i32_0 = arith.constant 0 : i32
    %c0_i32_1 = arith.constant 0 : i32
    return %c0_i32, %c0_i32_0 : i32, i32
  }
  func.func @transform_2(%arg0: i32, %arg1: i32) -> (i32, i32) {
    %c0_i32 = arith.constant 0 : i32
    %c0_i32_0 = arith.constant 0 : i32
    %c0_i32_1 = arith.constant 0 : i32
    return %c0_i32, %c0_i32_0 : i32, i32
  }
  func.func @transform_3(%arg0: i32, %arg1: i32) -> (i32, i32, i32) {
    %c0_i32 = arith.constant 0 : i32
    %c0_i32_0 = arith.constant 0 : i32
    return %arg0, %arg1, %c0_i32 : i32, i32, i32
  }
  func.func @transform_4(%arg0: i32, %arg1: i32) -> (i32, i32, i32, i32) {
    %c0_i32 = arith.constant 0 : i32
    %c0_i32_0 = arith.constant 0 : i32
    %c0_i32_1 = arith.constant 0 : i32
    return %arg0, %c0_i32, %arg1, %c0_i32_0 : i32, i32, i32, i32
  }
  func.func @transform_5(%arg0: i32, %arg1: i32) -> (i32, i32, i32) {
    %c0_i32 = arith.constant 0 : i32
    %c0_i32_0 = arith.constant 0 : i32
    return %arg0, %arg1, %c0_i32 : i32, i32, i32
  }
  func.func @transform_6(%arg0: i32, %arg1: i32) -> (i32, i32, i32) {
    %c0_i32 = arith.constant 0 : i32
    %c0_i32_0 = arith.constant 0 : i32
    return %arg0, %arg1, %c0_i32 : i32, i32, i32
  }
}

</mosaic_0001>

<llo_original>
// kernel: tpu_custom_call.1
$region0: #{tpu_custom_call.1}
  #allocation0 [shape = 'u32[]', space=smem, size = 0x4, offset = 0x4, fixed_abs, tag = 'smem constant byte address 0x4 - core index']
  #allocation1 [shape = 'u32[144,128]{1,0:T(1,128)}', space=vmem, size = 0x12000, scoped, tag = 'internal scratch']
  %s0 = inlined_call_operand.hbm [shape: f32[2,9], index: 0, kind: input, shape index: {}]
  %s1 = inlined_call_operand.hbm [shape: f32[2,9], index: 1, kind: input, shape index: {}]
  %s2 = inlined_call_operand.hbm [shape: f32[3,16], index: 2, kind: input, shape index: {}]
  %s3 = inlined_call_operand.hbm [shape: f32[2,32,128], index: 3, kind: input, shape index: {}]
  %s4 = inlined_call_operand.hbm [shape: u8[2,1,32,128], index: 4, kind: input, shape index: {}]
  %s5 = inlined_call_operand.hbm [shape: s32[2,32,128], index: 5, kind: output, shape index: {0}]
  %s6 = inlined_call_operand.hbm [shape: f32[2,32,128], index: 6, kind: output, shape index: {1}]
  %7 = xla_tuple %s5, %s6
  %s8 = sld [smem:[#allocation0]]
  $region81: #{tpu_custom_call.1} parent=0
    _
  %s10 = ssub.s32 1, %s8
  %s11 = scalar_select 0, %s10, %s8
  $region1: #{tpu_custom_call.1} parent=0
    #allocation2 [shape = 'u8[1024]{0}', space=smem, size = 0x400, scoped, tag = 'input window, operand 0, single buffered']
    #allocation3 [shape = 's32[2]{0}', space=sflag, size = 0x8, scoped, tag = 'scoped memory for tpu_custom_call.1']
    #allocation4 [shape = 's32[2]{0}', space=sflag, size = 0x8, scoped, tag = 'scoped memory for tpu_custom_call.1']
    #allocation5 [shape = 's32[2]{0}', space=sflag, size = 0x8, scoped, tag = 'scoped memory for tpu_custom_call.1']
    #allocation6 [shape = 'u8[1024]{0}', space=smem, size = 0x400, scoped, tag = 'input window, operand 1, single buffered']
    #allocation7 [shape = 's32[1]{0}', space=sflag, size = 0x4, scoped, tag = 'scoped memory for tpu_custom_call.1']
    #allocation8 [shape = 'u8[2048]{0}', space=smem, size = 0x800, scoped, tag = 'input window, operand 2, single buffered']
    #allocation9 [shape = 'u8[32768]{0}', space=vmem, size = 0x8000, scoped, tag = 'input window, operand 3']
    #allocation10 [shape = 'u8[8192]{0}', space=vmem, size = 0x2000, scoped, tag = 'input window, operand 4']
    #allocation11 [shape = 's32[2]{0}', space=sflag, size = 0x8, scoped, tag = 'scoped memory for tpu_custom_call.1']
    #allocation12 [shape = 'u8[32768]{0}', space=vmem, size = 0x8000, scoped, tag = 'output window, operand 0']
    #allocation13 [shape = 'u8[32768]{0}', space=vmem, size = 0x8000, scoped, tag = 'output window, operand 1']
    #allocation14 [shape = 's32[2]{0}', space=sflag, size = 0x8, scoped, tag = 'scoped memory for tpu_custom_call.1']
    %12 = vsyncpa [#allocation5], 0
    %13 = vsyncpa [#allocation7], 0
    %14 = vsyncpa [#allocation3], 0
    %s15 = scalar_lea.sflag [#allocation3], 1
    %16 = vsyncpa %s15, 0
    %17 = vsyncpa [#allocation11], 0
    %s18 = scalar_lea.sflag [#allocation11], 1
    %19 = vsyncpa %s18, 0
    %20 = vsyncpa [#allocation4], 0
    %s21 = scalar_lea.sflag [#allocation4], 1
    %22 = vsyncpa %s21, 0
    %23 = vsyncpa [#allocation14], 0
    %s24 = scalar_lea.sflag [#allocation14], 1
    %25 = vsyncpa %s24, 0
    loop: start=0, step=1, limit=4
    $region2: #{tpu_custom_call.1} parent=1 // loop_pre_header
      _
    $region3: #{tpu_custom_call.1} parent=1 // loop_header
      %s27 = sphi 0, %s31
      %p28 = scmp.ge.s32.totalorder %s27, 4
      %s34 = sphi 0, %s46
      %s35 = sphi 0, %s42
      %s36 = sphi 0, %s34
      %s37 = sphi 0, %s35
      %s38 = sphi 0, %s36
      %s39 = sphi 0, %s37
      %s47 = sphi 0, %s47
      %s49 = sphi 0, %s47
      %s50 = sphi 0, %s49
      %s64 = sphi 0, %s50
      %s68 = sphi 0, %s68
      %s70 = sphi 0, %s68
      %s71 = sphi 0, %s70
      %s85 = sphi 0, %s71
      %s89 = sphi 0, %s89
      %s91 = sphi 0, %s89
      %s92 = sphi 0, %s91
      %s106 = sphi 0, %s92
      %s114 = sphi 0, %s116
      %s117 = sphi 0, %s114
      %s118 = sphi 0, %s117
      %s134 = sphi 0, %s118
      %s142 = sphi 0, %s144
      %s145 = sphi 0, %s142
      %s146 = sphi 0, %s145
      %s162 = sphi 0, %s146
      %s170 = sphi 0, %s172
      %s173 = sphi 0, %s170
      %s174 = sphi 0, %s173
      %s190 = sphi 0, %s174
      %s198 = sphi 0, %s200
      %s201 = sphi 0, %s198
      %s202 = sphi 0, %s201
      %s218 = sphi 0, %s202
    $region4: #{tpu_custom_call.1} parent=1 // loop_header_branch
      %30 = sbr.rel (%p28) target = $region8
    $region5: #{tpu_custom_call.1} parent=1 // loop_body
      %s32 = ssub.s32 %s27, 1
      %s33 = ssub.s32 %s27, 2
      %s40 = sadd.s32 1, %s35
      %p41 = scmp.ge.s32.totalorder %s40, 1
      %s42 = scalar_select %p41, 0, %s40
      %s43 = sadd.s32 1, %s34
      %s44 = scalar_select %p41, %s43, %s34
      %p45 = scmp.ge.s32.totalorder %s44, 2
      %s46 = scalar_select %p45, 0, %s44
      %s48 = sadd.s32 %s47, 1
      %p51 = scmp.eq.s32.totalorder %s27, 1
      %p52 = scmp.ne.s32.totalorder %s47, %s49
      %p53 = scmp.eq.s32.totalorder %s27, 0
      %p54 = por %p52, %p53
      %p55 = scmp.ne.s32.totalorder %s47, %s49
      %p56 = scmp.eq.s32.totalorder %s32, 1
      %p57 = por %p55, %p56
      %p58 = scmp.ne.s32.totalorder %s49, %s50
      %p59 = scmp.eq.s32.totalorder %s32, 0
      %p60 = por %p58, %p59
      %p61 = scmp.ne.s32.totalorder %s49, %s50
      %p62 = scmp.eq.s32.totalorder %s33, 1
      %p63 = por %p61, %p62
      %p65 = scmp.ne.s32.totalorder %s50, %s64
      %p66 = scmp.eq.s32.totalorder %s33, 0
      %p67 = por %p65, %p66
      %s69 = sadd.s32 %s68, 1
      %p72 = scmp.eq.s32.totalorder %s27, 1
      %p73 = scmp.ne.s32.totalorder %s68, %s70
      %p74 = scmp.eq.s32.totalorder %s27, 0
      %p75 = por %p73, %p74
      %p76 = scmp.ne.s32.totalorder %s68, %s70
      %p77 = scmp.eq.s32.totalorder %s32, 1
      %p78 = por %p76, %p77
      %p79 = scmp.ne.s32.totalorder %s70, %s71
      %p80 = scmp.eq.s32.totalorder %s32, 0
      %p81 = por %p79, %p80
      %p82 = scmp.ne.s32.totalorder %s70, %s71
      %p83 = scmp.eq.s32.totalorder %s33, 1
      %p84 = por %p82, %p83
      %p86 = scmp.ne.s32.totalorder %s71, %s85
      %p87 = scmp.eq.s32.totalorder %s33, 0
      %p88 = por %p86, %p87
      %s90 = sadd.s32 %s89, 1
      %p93 = scmp.eq.s32.totalorder %s27, 1
      %p94 = scmp.ne.s32.totalorder %s89, %s91
      %p95 = scmp.eq.s32.totalorder %s27, 0
      %p96 = por %p94, %p95
      %p97 = scmp.ne.s32.totalorder %s89, %s91
      %p98 = scmp.eq.s32.totalorder %s32, 1
      %p99 = por %p97, %p98
      %p100 = scmp.ne.s32.totalorder %s91, %s92
      %p101 = scmp.eq.s32.totalorder %s32, 0
      %p102 = por %p100, %p101
      %p103 = scmp.ne.s32.totalorder %s91, %s92
      %p104 = scmp.eq.s32.totalorder %s33, 1
      %p105 = por %p103, %p104
      %p107 = scmp.ne.s32.totalorder %s92, %s106
      %p108 = scmp.eq.s32.totalorder %s33, 0
      %p109 = por %p107, %p108
      %s110 = ssub.s32 %s34, %s46
      %s111 = ssub.s32 %s35, %s42
      %s112 = sor.u32 %s110, %s111
      %p113 = scmp.eq.s32.totalorder %s112, 0
      %s115 = sadd.s32 %s114, 1
      %s116 = scalar_select %p113, %s114, %s115
      %p119 = pneg %p113
      %p120 = scmp.eq.s32.totalorder %s27, 1
      %p121 = por %p119, %p120
      %p122 = scmp.ne.s32.totalorder %s114, %s117
      %p123 = scmp.eq.s32.totalorder %s27, 0
      %p124 = por %p122, %p123
      %p125 = scmp.ne.s32.totalorder %s114, %s117
      %p126 = scmp.eq.s32.totalorder %s32, 1
      %p127 = por %p125, %p126
      %p128 = scmp.ne.s32.totalorder %s117, %s118
      %p129 = scmp.eq.s32.totalorder %s32, 0
      %p130 = por %p128, %p129
      %p131 = scmp.ne.s32.totalorder %s117, %s118
      %p132 = scmp.eq.s32.totalorder %s33, 1
      %p133 = por %p131, %p132
      %p135 = scmp.ne.s32.totalorder %s118, %s134
      %p136 = scmp.eq.s32.totalorder %s33, 0
      %p137 = por %p135, %p136
      %s138 = ssub.s32 %s34, %s46
      %s139 = ssub.s32 %s35, %s42
      %s140 = sor.u32 %s138, %s139
      %p141 = scmp.eq.s32.totalorder %s140, 0
      %s143 = sadd.s32 %s142, 1
      %s144 = scalar_select %p141, %s142, %s143
      %p147 = pneg %p141
      %p148 = scmp.eq.s32.totalorder %s27, 1
      %p149 = por %p147, %p148
      %p150 = scmp.ne.s32.totalorder %s142, %s145
      %p151 = scmp.eq.s32.totalorder %s27, 0
      %p152 = por %p150, %p151
      %p153 = scmp.ne.s32.totalorder %s142, %s145
      %p154 = scmp.eq.s32.totalorder %s32, 1
      %p155 = por %p153, %p154
      %p156 = scmp.ne.s32.totalorder %s145, %s146
      %p157 = scmp.eq.s32.totalorder %s32, 0
      %p158 = por %p156, %p157
      %p159 = scmp.ne.s32.totalorder %s145, %s146
      %p160 = scmp.eq.s32.totalorder %s33, 1
      %p161 = por %p159, %p160
      %p163 = scmp.ne.s32.totalorder %s146, %s162
      %p164 = scmp.eq.s32.totalorder %s33, 0
      %p165 = por %p163, %p164
      %s166 = ssub.s32 %s34, %s46
      %s167 = ssub.s32 %s35, %s42
      %s168 = sor.u32 %s166, %s167
      %p169 = scmp.eq.s32.totalorder %s168, 0
      %s171 = sadd.s32 %s170, 1
      %s172 = scalar_select %p169, %s170, %s171
      %p175 = pneg %p169
      %p176 = scmp.eq.s32.totalorder %s27, 1
      %p177 = por %p175, %p176
      %p178 = scmp.ne.s32.totalorder %s170, %s173
      %p179 = scmp.eq.s32.totalorder %s27, 0
      %p180 = por %p178, %p179
      %p181 = scmp.ne.s32.totalorder %s170, %s173
      %p182 = scmp.eq.s32.totalorder %s32, 1
      %p183 = por %p181, %p182
      %p184 = scmp.ne.s32.totalorder %s173, %s174
      %p185 = scmp.eq.s32.totalorder %s32, 0
      %p186 = por %p184, %p185
      %p187 = scmp.ne.s32.totalorder %s173, %s174
      %p188 = scmp.eq.s32.totalorder %s33, 1
      %p189 = por %p187, %p188
      %p191 = scmp.ne.s32.totalorder %s174, %s190
      %p192 = scmp.eq.s32.totalorder %s33, 0
      %p193 = por %p191, %p192
      %s194 = ssub.s32 %s34, %s46
      %s195 = ssub.s32 %s35, %s42
      %s196 = sor.u32 %s194, %s195
      %p197 = scmp.eq.s32.totalorder %s196, 0
      %s199 = sadd.s32 %s198, 1
      %s200 = scalar_select %p197, %s198, %s199
      %p203 = pneg %p197
      %p204 = scmp.eq.s32.totalorder %s27, 1
      %p205 = por %p203, %p204
      %p206 = scmp.ne.s32.totalorder %s198, %s201
      %p207 = scmp.eq.s32.totalorder %s27, 0
      %p208 = por %p206, %p207
      %p209 = scmp.ne.s32.totalorder %s198, %s201
      %p210 = scmp.eq.s32.totalorder %s32, 1
      %p211 = por %p209, %p210
      %p212 = scmp.ne.s32.totalorder %s201, %s202
      %p213 = scmp.eq.s32.totalorder %s32, 0
      %p214 = por %p212, %p213
      %p215 = scmp.ne.s32.totalorder %s201, %s202
      %p216 = scmp.eq.s32.totalorder %s33, 1
      %p217 = por %p215, %p216
      %p219 = scmp.ne.s32.totalorder %s202, %s218
      %p220 = scmp.eq.s32.totalorder %s33, 0
      %p221 = por %p219, %p220
      %p222 = scmp.le.s32.totalorder 1, %s27
      %p223 = scmp.lt.s32.totalorder %s27, 3
      %p224 = pnand %p222, %p223
      %p225 = pneg %p224
      // Predicated region
      $region9: #{tpu_custom_call.1} parent=5 // pred_check
        _
      $region10: #{tpu_custom_call.1} parent=5 // pred_check_branch
        %227 = sbr.rel (%p224) target = $region12
      $region11: #{tpu_custom_call.1} parent=5 // pred_region
        %s228 = ssub.s32 %s27, 1
        // Predicated region
        $region13: #{tpu_custom_call.1} parent=11 // pred_check
          %p229 = pneg %p60
        $region14: #{tpu_custom_call.1} parent=11 // pred_check_branch
          %231 = sbr.rel (%p229) target = $region16
        $region15: #{tpu_custom_call.1} parent=11 // pred_region
          %s233 = ssub.s32 32, 32
          %234 = vsyncadd [#allocation5], %s233
          %237 = dma.hbm_to_smem %s0, 32, [#allocation2], [#allocation5]
        $region16: #{tpu_custom_call.1} parent=11 // pred_fallthru
          _
        // Predicated region
        $region17: #{tpu_custom_call.1} parent=11 // pred_check
          %p238 = pneg %p81
        $region18: #{tpu_custom_call.1} parent=11 // pred_check_branch
          %240 = sbr.rel (%p238) target = $region20
        $region19: #{tpu_custom_call.1} parent=11 // pred_region
          %s242 = ssub.s32 32, 32
          %243 = vsyncadd [#allocation7], %s242
          %246 = dma.hbm_to_smem %s1, 32, [#allocation6], [#allocation7]
        $region20: #{tpu_custom_call.1} parent=11 // pred_fallthru
          _
        // Predicated region
        $region21: #{tpu_custom_call.1} parent=11 // pred_check
          %p247 = pneg %p102
        $region22: #{tpu_custom_call.1} parent=11 // pred_check_branch
          %249 = sbr.rel (%p247) target = $region24
        $region23: #{tpu_custom_call.1} parent=11 // pred_region
          %s251 = ssub.s32 64, 64
          %252 = vsyncadd [#allocation7], %s251
          %255 = dma.hbm_to_smem %s2, 64, [#allocation8], [#allocation7]
        $region24: #{tpu_custom_call.1} parent=11 // pred_fallthru
          _
      $region12: #{tpu_custom_call.1} parent=5 // pred_fallthru
        _
      %p256 = scmp.lt.s32.totalorder %s27, 2
      // Predicated region
      $region25: #{tpu_custom_call.1} parent=5 // pred_check
        %p257 = pneg %p256
      $region26: #{tpu_custom_call.1} parent=5 // pred_check_branch
        %259 = sbr.rel (%p257) target = $region28
      $region27: #{tpu_custom_call.1} parent=5 // pred_region
        // Predicated region
        $region29: #{tpu_custom_call.1} parent=27 // pred_check
          %p260 = pneg %p124
        $region30: #{tpu_custom_call.1} parent=27 // pred_check_branch
          %262 = sbr.rel (%p260) target = $region32
        $region31: #{tpu_custom_call.1} parent=27 // pred_region
          %s263 = sand.u32 %s114, 1
          %s264 = scalar_lea.sflag [#allocation3], %s263
          %s265 = sand.u32 %s114, 1
          %s266 = smul.addr %s265, 32
          %s267 = scalar_lea.vmem [#allocation9], %s266
          %s268 = smul.u32 4, %s35
          %s270 = ssub.s32 512, 512
          %271 = vsyncadd %s264, %s270
          %s272 = smul.addr %s34, 4
          %s273 = sadd.s32 %s268, %s272
          %s274 = smul.addr %s273, 128
          %s275 = scalar_lea.hbm %s3, %s274
          %s276 = sshll.u32 %s267, 4
          %s277 = int_to_ptr.vmem [resolvable:$true] %s276
          %282 = dma.hbm_to_vmem [thread:$0]  %s275, 512, %s277, %s264, 128, 128, 8
        $region32: #{tpu_custom_call.1} parent=27 // pred_fallthru
          _
        // Predicated region
        $region33: #{tpu_custom_call.1} parent=27 // pred_check
          %p283 = pneg %p152
        $region34: #{tpu_custom_call.1} parent=27 // pred_check_branch
          %285 = sbr.rel (%p283) target = $region36
        $region35: #{tpu_custom_call.1} parent=27 // pred_region
          %s286 = sand.u32 %s142, 1
          %s287 = scalar_lea.sflag [#allocation11], %s286
          %s288 = sand.u32 %s142, 1
          %s289 = smul.addr %s288, 8
          %s290 = scalar_lea.vmem [#allocation10], %s289
          %s292 = ssub.s32 128, 128
          %293 = vsyncadd %s287, %s292
          %s294 = sadd.s32 %s35, %s34
          %s295 = smul.addr %s294, 128
          %s296 = scalar_lea.hbm %s4, %s295
          %s298 = sshll.u32 %s290, 4
          %s299 = int_to_ptr.vmem [resolvable:$true] %s298
          %301 = dma.hbm_to_vmem [thread:$0]  %s296, 128, %s299, %s287
        $region36: #{tpu_custom_call.1} parent=27 // pred_fallthru
          _
      $region28: #{tpu_custom_call.1} parent=5 // pred_fallthru
        _
      %p302 = scmp.le.s32.totalorder 1, %s27
      %p303 = scmp.lt.s32.totalorder %s27, 3
      %p304 = pnand %p302, %p303
      %p305 = pneg %p304
      // Predicated region
      $region37: #{tpu_custom_call.1} parent=5 // pred_check
        _
      $region38: #{tpu_custom_call.1} parent=5 // pred_check_branch
        %307 = sbr.rel (%p304) target = $region40
      $region39: #{tpu_custom_call.1} parent=5 // pred_region
        %s308 = ssub.s32 %s27, 1
        // Predicated region
        $region41: #{tpu_custom_call.1} parent=39 // pred_check
          %p309 = pneg %p60
        $region42: #{tpu_custom_call.1} parent=39 // pred_check_branch
          %311 = sbr.rel (%p309) target = $region44
        $region43: #{tpu_custom_call.1} parent=39 // pred_region
          %312 = dma.done [#allocation5], 32
        $region44: #{tpu_custom_call.1} parent=39 // pred_fallthru
          _
        // Predicated region
        $region45: #{tpu_custom_call.1} parent=39 // pred_check
          %p313 = pneg %p81
        $region46: #{tpu_custom_call.1} parent=39 // pred_check_branch
          %315 = sbr.rel (%p313) target = $region48
        $region47: #{tpu_custom_call.1} parent=39 // pred_region
          %316 = dma.done [#allocation7], 32
        $region48: #{tpu_custom_call.1} parent=39 // pred_fallthru
          _
        // Predicated region
        $region49: #{tpu_custom_call.1} parent=39 // pred_check
          %p317 = pneg %p102
        $region50: #{tpu_custom_call.1} parent=39 // pred_check_branch
          %319 = sbr.rel (%p317) target = $region52
        $region51: #{tpu_custom_call.1} parent=39 // pred_region
          %320 = dma.done [#allocation7], 64
        $region52: #{tpu_custom_call.1} parent=39 // pred_fallthru
          _
        %s321 = sand.u32 %s117, 1
        %s322 = scalar_lea.sflag [#allocation3], %s321
        %s323 = sand.u32 %s117, 1
        %s324 = smul.addr %s323, 32
        %s325 = scalar_lea.vmem [#allocation9], %s324
        // Predicated region
        $region53: #{tpu_custom_call.1} parent=39 // pred_check
          %p326 = pneg %p130
        $region54: #{tpu_custom_call.1} parent=39 // pred_check_branch
          %328 = sbr.rel (%p326) target = $region56
        $region55: #{tpu_custom_call.1} parent=39 // pred_region
          %329 = dma.done %s322, 512
        $region56: #{tpu_custom_call.1} parent=39 // pred_fallthru
          _
        %s330 = sand.u32 %s145, 1
        %s331 = scalar_lea.sflag [#allocation11], %s330
        %s332 = sand.u32 %s145, 1
        %s333 = smul.addr %s332, 8
        %s334 = scalar_lea.vmem [#allocation10], %s333
        // Predicated region
        $region57: #{tpu_custom_call.1} parent=39 // pred_check
          %p335 = pneg %p158
        $region58: #{tpu_custom_call.1} parent=39 // pred_check_branch
          %337 = sbr.rel (%p335) target = $region60
        $region59: #{tpu_custom_call.1} parent=39 // pred_region
          %338 = dma.done %s331, 128
        $region60: #{tpu_custom_call.1} parent=39 // pred_fallthru
          _
        %339 = sfence
        %p340 = pneg %p60
        %p341 = pneg %p57
        %p342 = pneg %p81
        %p343 = pneg %p78
        %p344 = pneg %p102
        %p345 = pneg %p99
        %s346 = sand.u32 %s117, 1
        %s347 = scalar_lea.sflag [#allocation3], %s346
        %s348 = sand.u32 %s117, 1
        %s349 = smul.addr %s348, 32
        %s350 = scalar_lea.vmem [#allocation9], %s349
        %p351 = pneg %p130
        %p352 = pneg %p127
        %s353 = sand.u32 %s145, 1
        %s354 = scalar_lea.sflag [#allocation11], %s353
        %s355 = sand.u32 %s145, 1
        %s356 = smul.addr %s355, 8
        %s357 = scalar_lea.vmem [#allocation10], %s356
        %p358 = pneg %p158
        %p359 = pneg %p155
        %p360 = pneg %p186
        %p361 = pneg %p183
        %s362 = sand.u32 %s173, 1
        %s363 = scalar_lea.sflag [#allocation4], %s362
        %s364 = sand.u32 %s173, 1
        %s365 = smul.addr %s364, 32
        %s366 = scalar_lea.vmem [#allocation12], %s365
        %p367 = pneg %p214
        %p368 = pneg %p211
        %s369 = sand.u32 %s201, 1
        %s370 = scalar_lea.sflag [#allocation14], %s369
        %s371 = sand.u32 %s201, 1
        %s372 = smul.addr %s371, 32
        %s373 = scalar_lea.vmem [#allocation13], %s372
        %s374 = smul.u32 4, %s37
        %s375 = smul.u32 4, %s37
        %s376 = smul.u32 4, %s37
        %v377 = vlaneseq
        %v378 = vshrl.u32 %v377, 7
        %v379 = vadd.s32 %v378, 8
        %v380 = vadd.s32 %v378, 16
        %v381 = vadd.s32 %v378, 24
        %v382 = vlaneseq
        %v383 = vand.u32 %v382, 127
        %s384 = smul.u32 %s37, 32
        %v385 = vstv %s384
        %v386 = vadd.s32 %v385, %v378
        %v387 = vadd.s32 %v385, %v379
        %v388 = vadd.s32 %v385, %v380
        %v389 = vadd.s32 %v385, %v381
        %v390 = vcvt.s32.f32 %v386
        %v391 = vcvt.s32.f32 %v387
        %v392 = vcvt.s32.f32 %v388
        %v393 = vcvt.s32.f32 %v389
        %v394 = vcvt.s32.f32 %v383
        %v395 = vld [vmem:[%s325] sm:$0xff]
        %v396 = vld [vmem:[%s325 + $0x8] sm:$0xff]
        %v397 = vld [vmem:[%s325 + $0x10] sm:$0xff]
        %v398 = vld [vmem:[%s325 + $0x18] sm:$0xff]
        %s399 = smul.u32 %s36, 128
        %s400 = sld [smem:[#allocation2 + %s399]]
        %v401 = vstv %s400
        %v402 = vmul.f32 %v401, %v394
        %s403 = sadd.s32 %s399, 1
        %s404 = sld [smem:[#allocation2 + %s403]]
        %v405 = vstv %s404
        %v406 = vmul.f32 %v405, %v390
        %v407 = vmul.f32 %v405, %v391
        %v408 = vmul.f32 %v405, %v392
        %v409 = vmul.f32 %v405, %v393
        %v410 = vadd.f32 %v402, %v406
        %v411 = vadd.f32 %v402, %v407
        %v412 = vadd.f32 %v402, %v408
        %v413 = vadd.f32 %v402, %v409
        %s414 = sadd.s32 %s399, 2
        %s415 = sld [smem:[#allocation2 + %s414]]
        %v416 = vstv %s415
        %v417 = vadd.f32 %v410, %v416
        %v418 = vadd.f32 %v411, %v416
        %v419 = vadd.f32 %v412, %v416
        %v420 = vadd.f32 %v413, %v416
        %v421 = vmul.f32 %v417, %v395
        %v422 = vmul.f32 %v418, %v396
        %v423 = vmul.f32 %v419, %v397
        %v424 = vmul.f32 %v420, %v398
        %s425 = sadd.s32 %s399, 3
        %s426 = sld [smem:[#allocation2 + %s425]]
        %v427 = vstv %s426
        %v428 = vmul.f32 %v427, %v394
        %s429 = sadd.s32 %s399, 4
        %s430 = sld [smem:[#allocation2 + %s429]]
        %v431 = vstv %s430
        %v432 = vmul.f32 %v431, %v390
        %v433 = vmul.f32 %v431, %v391
        %v434 = vmul.f32 %v431, %v392
        %v435 = vmul.f32 %v431, %v393
        %v436 = vadd.f32 %v428, %v432
        %v437 = vadd.f32 %v428, %v433
        %v438 = vadd.f32 %v428, %v434
        %v439 = vadd.f32 %v428, %v435
        %s440 = sadd.s32 %s399, 5
        %s441 = sld [smem:[#allocation2 + %s440]]
        %v442 = vstv %s441
        %v443 = vadd.f32 %v436, %v442
        %v444 = vadd.f32 %v437, %v442
        %v445 = vadd.f32 %v438, %v442
        %v446 = vadd.f32 %v439, %v442
        %v447 = vmul.f32 %v443, %v395
        %v448 = vmul.f32 %v444, %v396
        %v449 = vmul.f32 %v445, %v397
        %v450 = vmul.f32 %v446, %v398
        %s451 = sadd.s32 %s399, 6
        %s452 = sld [smem:[#allocation2 + %s451]]
        %v453 = vstv %s452
        %v454 = vmul.f32 %v453, %v394
        %s455 = sadd.s32 %s399, 7
        %s456 = sld [smem:[#allocation2 + %s455]]
        %v457 = vstv %s456
        %v458 = vmul.f32 %v457, %v390
        %v459 = vmul.f32 %v457, %v391
        %v460 = vmul.f32 %v457, %v392
        %v461 = vmul.f32 %v457, %v393
        %v462 = vadd.f32 %v454, %v458
        %v463 = vadd.f32 %v454, %v459
        %v464 = vadd.f32 %v454, %v460
        %v465 = vadd.f32 %v454, %v461
        %s466 = sadd.s32 %s399, 8
        %s467 = sld [smem:[#allocation2 + %s466]]
        %v468 = vstv %s467
        %v469 = vadd.f32 %v462, %v468
        %v470 = vadd.f32 %v463, %v468
        %v471 = vadd.f32 %v464, %v468
        %v472 = vadd.f32 %v465, %v468
        %v473 = vmul.f32 %v469, %v395
        %v474 = vmul.f32 %v470, %v396
        %v475 = vmul.f32 %v471, %v397
        %v476 = vmul.f32 %v472, %v398
        %v477 = vld [vmem:[%s334] sm:$0xff]
        %v478 = vunpack.c.0.s8 %v477
        %v479 = vunpack.c.1.s8 %v477
        %v480 = vunpack.c.2.s8 %v477
        %v481 = vunpack.c.3.s8 %v477
        %v482 = vand.u32 %v478, 255
        %v483 = vand.u32 %v479, 255
        %v484 = vand.u32 %v480, 255
        %v485 = vand.u32 %v481, 255
        %s486 = sld [smem:[#allocation8]]
        %v487 = vstv %s486
        %v488 = vmul.f32 %v487, %v421
        %v489 = vmul.f32 %v487, %v422
        %v490 = vmul.f32 %v487, %v423
        %v491 = vmul.f32 %v487, %v424
        %s492 = sld [smem:[#allocation8 + $0x1]]
        %v493 = vstv %s492
        %v494 = vmul.f32 %v493, %v447
        %v495 = vmul.f32 %v493, %v448
        %v496 = vmul.f32 %v493, %v449
        %v497 = vmul.f32 %v493, %v450
        %v498 = vadd.f32 %v488, %v494
        %v499 = vadd.f32 %v489, %v495
        %v500 = vadd.f32 %v490, %v496
        %v501 = vadd.f32 %v491, %v497
        %s502 = sld [smem:[#allocation8 + $0x2]]
        %v503 = vstv %s502
        %v504 = vmul.f32 %v503, %v473
        %v505 = vmul.f32 %v503, %v474
        %v506 = vmul.f32 %v503, %v475
        %v507 = vmul.f32 %v503, %v476
        %v508 = vadd.f32 %v498, %v504
        %v509 = vadd.f32 %v499, %v505
        %v510 = vadd.f32 %v500, %v506
        %v511 = vadd.f32 %v501, %v507
        %s512 = sld [smem:[#allocation8 + $0x3]]
        %v513 = vstv %s512
        %v514 = vadd.f32 %v508, %v513
        %v515 = vadd.f32 %v509, %v513
        %v516 = vadd.f32 %v510, %v513
        %v517 = vadd.f32 %v511, %v513
        %s518 = sld [smem:[#allocation8 + $0x4]]
        %v519 = vstv %s518
        %v520 = vmul.f32 %v519, %v421
        %v521 = vmul.f32 %v519, %v422
        %v522 = vmul.f32 %v519, %v423
        %v523 = vmul.f32 %v519, %v424
        %s524 = sld [smem:[#allocation8 + $0x5]]
        %v525 = vstv %s524
        %v526 = vmul.f32 %v525, %v447
        %v527 = vmul.f32 %v525, %v448
        %v528 = vmul.f32 %v525, %v449
        %v529 = vmul.f32 %v525, %v450
        %v530 = vadd.f32 %v520, %v526
        %v531 = vadd.f32 %v521, %v527
        %v532 = vadd.f32 %v522, %v528
        %v533 = vadd.f32 %v523, %v529
        %s534 = sld [smem:[#allocation8 + $0x6]]
        %v535 = vstv %s534
        %v536 = vmul.f32 %v535, %v473
        %v537 = vmul.f32 %v535, %v474
        %v538 = vmul.f32 %v535, %v475
        %v539 = vmul.f32 %v535, %v476
        %v540 = vadd.f32 %v530, %v536
        %v541 = vadd.f32 %v531, %v537
        %v542 = vadd.f32 %v532, %v538
        %v543 = vadd.f32 %v533, %v539
        %s544 = sld [smem:[#allocation8 + $0x7]]
        %v545 = vstv %s544
        %v546 = vadd.f32 %v540, %v545
        %v547 = vadd.f32 %v541, %v545
        %v548 = vadd.f32 %v542, %v545
        %v549 = vadd.f32 %v543, %v545
        %s550 = sld [smem:[#allocation8 + $0x8]]
        %v551 = vstv %s550
        %v552 = vmul.f32 %v551, %v421
        %v553 = vmul.f32 %v551, %v422
        %v554 = vmul.f32 %v551, %v423
        %v555 = vmul.f32 %v551, %v424
        %s556 = sld [smem:[#allocation8 + $0x9]]
        %v557 = vstv %s556
        %v558 = vmul.f32 %v557, %v447
        %v559 = vmul.f32 %v557, %v448
        %v560 = vmul.f32 %v557, %v449
        %v561 = vmul.f32 %v557, %v450
        %v562 = vadd.f32 %v552, %v558
        %v563 = vadd.f32 %v553, %v559
        %v564 = vadd.f32 %v554, %v560
        %v565 = vadd.f32 %v555, %v561
        %s566 = sld [smem:[#allocation8 + $0xa]]
        %v567 = vstv %s566
        %v568 = vmul.f32 %v567, %v473
        %v569 = vmul.f32 %v567, %v474
        %v570 = vmul.f32 %v567, %v475
        %v571 = vmul.f32 %v567, %v476
        %v572 = vadd.f32 %v562, %v568
        %v573 = vadd.f32 %v563, %v569
        %v574 = vadd.f32 %v564, %v570
        %v575 = vadd.f32 %v565, %v571
        %s576 = sld [smem:[#allocation8 + $0xb]]
        %v577 = vstv %s576
        %v578 = vadd.f32 %v572, %v577
        %v579 = vadd.f32 %v573, %v577
        %v580 = vadd.f32 %v574, %v577
        %v581 = vadd.f32 %v575, %v577
        %s582 = sld [smem:[#allocation8 + $0xc]]
        %v583 = vstv %s582
        %v584 = vmul.f32 %v583, %v421
        %v585 = vmul.f32 %v583, %v422
        %v586 = vmul.f32 %v583, %v423
        %v587 = vmul.f32 %v583, %v424
        %s588 = sld [smem:[#allocation8 + $0xd]]
        %v589 = vstv %s588
        %v590 = vmul.f32 %v589, %v447
        %v591 = vmul.f32 %v589, %v448
        %v592 = vmul.f32 %v589, %v449
        %v593 = vmul.f32 %v589, %v450
        %v594 = vadd.f32 %v584, %v590
        %v595 = vadd.f32 %v585, %v591
        %v596 = vadd.f32 %v586, %v592
        %v597 = vadd.f32 %v587, %v593
        %s598 = sld [smem:[#allocation8 + $0xe]]
        %v599 = vstv %s598
        %v600 = vmul.f32 %v599, %v473
        %v601 = vmul.f32 %v599, %v474
        %v602 = vmul.f32 %v599, %v475
        %v603 = vmul.f32 %v599, %v476
        %v604 = vadd.f32 %v594, %v600
        %v605 = vadd.f32 %v595, %v601
        %v606 = vadd.f32 %v596, %v602
        %v607 = vadd.f32 %v597, %v603
        %s608 = sld [smem:[#allocation8 + $0xf]]
        %v609 = vstv %s608
        %v610 = vadd.f32 %v604, %v609
        %v611 = vadd.f32 %v605, %v609
        %v612 = vadd.f32 %v606, %v609
        %v613 = vadd.f32 %v607, %v609
        %v614 = vand.u32 %v482, 1
        %v615 = vand.u32 %v483, 1
        %v616 = vand.u32 %v484, 1
        %v617 = vand.u32 %v485, 1
        %vm618 = vcmp.ne.s32.totalorder %v614, 0
        %vm619 = vcmp.ne.s32.totalorder %v615, 0
        %vm620 = vcmp.ne.s32.totalorder %v616, 0
        %vm621 = vcmp.ne.s32.totalorder %v617, 0
        %v622 = vsel %vm618, %v514, %v421
        %v623 = vsel %vm619, %v515, %v422
        %v624 = vsel %vm620, %v516, %v423
        %v625 = vsel %vm621, %v517, %v424
        %v626 = vsel %vm618, %v546, %v447
        %v627 = vsel %vm619, %v547, %v448
        %v628 = vsel %vm620, %v548, %v449
        %v629 = vsel %vm621, %v549, %v450
        %v630 = vsel %vm618, %v578, %v473
        %v631 = vsel %vm619, %v579, %v474
        %v632 = vsel %vm620, %v580, %v475
        %v633 = vsel %vm621, %v581, %v476
        %v634 = vsel %vm618, %v610, 1.0
        %v635 = vsel %vm619, %v611, 1.0
        %v636 = vsel %vm620, %v612, 1.0
        %v637 = vsel %vm621, %v613, 1.0
        %s638 = sld [smem:[#allocation8 + $0x80]]
        %v639 = vstv %s638
        %v640 = vmul.f32 %v639, %v421
        %v641 = vmul.f32 %v639, %v422
        %v642 = vmul.f32 %v639, %v423
        %v643 = vmul.f32 %v639, %v424
        %s644 = sld [smem:[#allocation8 + $0x81]]
        %v645 = vstv %s644
        %v646 = vmul.f32 %v645, %v447
        %v647 = vmul.f32 %v645, %v448
        %v648 = vmul.f32 %v645, %v449
        %v649 = vmul.f32 %v645, %v450
        %v650 = vadd.f32 %v640, %v646
        %v651 = vadd.f32 %v641, %v647
        %v652 = vadd.f32 %v642, %v648
        %v653 = vadd.f32 %v643, %v649
        %s654 = sld [smem:[#allocation8 + $0x82]]
        %v655 = vstv %s654
        %v656 = vmul.f32 %v655, %v473
        %v657 = vmul.f32 %v655, %v474
        %v658 = vmul.f32 %v655, %v475
        %v659 = vmul.f32 %v655, %v476
        %v660 = vadd.f32 %v650, %v656
        %v661 = vadd.f32 %v651, %v657
        %v662 = vadd.f32 %v652, %v658
        %v663 = vadd.f32 %v653, %v659
        %s664 = sld [smem:[#allocation8 + $0x83]]
        %v665 = vstv %s664
        %v666 = vadd.f32 %v660, %v665
        %v667 = vadd.f32 %v661, %v665
        %v668 = vadd.f32 %v662, %v665
        %v669 = vadd.f32 %v663, %v665
        %s670 = sld [smem:[#allocation8 + $0x84]]
        %v671 = vstv %s670
        %v672 = vmul.f32 %v671, %v421
        %v673 = vmul.f32 %v671, %v422
        %v674 = vmul.f32 %v671, %v423
        %v675 = vmul.f32 %v671, %v424
        %s676 = sld [smem:[#allocation8 + $0x85]]
        %v677 = vstv %s676
        %v678 = vmul.f32 %v677, %v447
        %v679 = vmul.f32 %v677, %v448
        %v680 = vmul.f32 %v677, %v449
        %v681 = vmul.f32 %v677, %v450
        %v682 = vadd.f32 %v672, %v678
        %v683 = vadd.f32 %v673, %v679
        %v684 = vadd.f32 %v674, %v680
        %v685 = vadd.f32 %v675, %v681
        %s686 = sld [smem:[#allocation8 + $0x86]]
        %v687 = vstv %s686
        %v688 = vmul.f32 %v687, %v473
        %v689 = vmul.f32 %v687, %v474
        %v690 = vmul.f32 %v687, %v475
        %v691 = vmul.f32 %v687, %v476
        %v692 = vadd.f32 %v682, %v688
        %v693 = vadd.f32 %v683, %v689
        %v694 = vadd.f32 %v684, %v690
        %v695 = vadd.f32 %v685, %v691
        %s696 = sld [smem:[#allocation8 + $0x87]]
        %v697 = vstv %s696
        %v698 = vadd.f32 %v692, %v697
        %v699 = vadd.f32 %v693, %v697
        %v700 = vadd.f32 %v694, %v697
        %v701 = vadd.f32 %v695, %v697
        %s702 = sld [smem:[#allocation8 + $0x88]]
        %v703 = vstv %s702
        %v704 = vmul.f32 %v703, %v421
        %v705 = vmul.f32 %v703, %v422
        %v706 = vmul.f32 %v703, %v423
        %v707 = vmul.f32 %v703, %v424
        %s708 = sld [smem:[#allocation8 + $0x89]]
        %v709 = vstv %s708
        %v710 = vmul.f32 %v709, %v447
        %v711 = vmul.f32 %v709, %v448
        %v712 = vmul.f32 %v709, %v449
        %v713 = vmul.f32 %v709, %v450
        %v714 = vadd.f32 %v704, %v710
        %v715 = vadd.f32 %v705, %v711
        %v716 = vadd.f32 %v706, %v712
        %v717 = vadd.f32 %v707, %v713
        %s718 = sld [smem:[#allocation8 + $0x8a]]
        %v719 = vstv %s718
        %v720 = vmul.f32 %v719, %v473
        %v721 = vmul.f32 %v719, %v474
        %v722 = vmul.f32 %v719, %v475
        %v723 = vmul.f32 %v719, %v476
        %v724 = vadd.f32 %v714, %v720
        %v725 = vadd.f32 %v715, %v721
        %v726 = vadd.f32 %v716, %v722
        %v727 = vadd.f32 %v717, %v723
        %s728 = sld [smem:[#allocation8 + $0x8b]]
        %v729 = vstv %s728
        %v730 = vadd.f32 %v724, %v729
        %v731 = vadd.f32 %v725, %v729
        %v732 = vadd.f32 %v726, %v729
        %v733 = vadd.f32 %v727, %v729
        %s734 = sld [smem:[#allocation8 + $0x8c]]
        %v735 = vstv %s734
        %v736 = vmul.f32 %v735, %v421
        %v737 = vmul.f32 %v735, %v422
        %v738 = vmul.f32 %v735, %v423
        %v739 = vmul.f32 %v735, %v424
        %s740 = sld [smem:[#allocation8 + $0x8d]]
        %v741 = vstv %s740
        %v742 = vmul.f32 %v741, %v447
        %v743 = vmul.f32 %v741, %v448
        %v744 = vmul.f32 %v741, %v449
        %v745 = vmul.f32 %v741, %v450
        %v746 = vadd.f32 %v736, %v742
        %v747 = vadd.f32 %v737, %v743
        %v748 = vadd.f32 %v738, %v744
        %v749 = vadd.f32 %v739, %v745
        %s750 = sld [smem:[#allocation8 + $0x8e]]
        %v751 = vstv %s750
        %v752 = vmul.f32 %v751, %v473
        %v753 = vmul.f32 %v751, %v474
        %v754 = vmul.f32 %v751, %v475
        %v755 = vmul.f32 %v751, %v476
        %v756 = vadd.f32 %v746, %v752
        %v757 = vadd.f32 %v747, %v753
        %v758 = vadd.f32 %v748, %v754
        %v759 = vadd.f32 %v749, %v755
        %s760 = sld [smem:[#allocation8 + $0x8f]]
        %v761 = vstv %s760
        %v762 = vadd.f32 %v756, %v761
        %v763 = vadd.f32 %v757, %v761
        %v764 = vadd.f32 %v758, %v761
        %v765 = vadd.f32 %v759, %v761
        %v766 = vshra.s32 %v482, 1
        %v767 = vshra.s32 %v483, 1
        %v768 = vshra.s32 %v484, 1
        %v769 = vshra.s32 %v485, 1
        %v770 = vand.u32 %v766, 1
        %v771 = vand.u32 %v767, 1
        %v772 = vand.u32 %v768, 1
        %v773 = vand.u32 %v769, 1
        %vm774 = vcmp.ne.s32.totalorder %v770, 0
        %vm775 = vcmp.ne.s32.totalorder %v771, 0
        %vm776 = vcmp.ne.s32.totalorder %v772, 0
        %vm777 = vcmp.ne.s32.totalorder %v773, 0
        %v778 = vsel %vm774, %v666, %v622
        %v779 = vsel %vm775, %v667, %v623
        %v780 = vsel %vm776, %v668, %v624
        %v781 = vsel %vm777, %v669, %v625
        %v782 = vsel %vm774, %v698, %v626
        %v783 = vsel %vm775, %v699, %v627
        %v784 = vsel %vm776, %v700, %v628
        %v785 = vsel %vm777, %v701, %v629
        %v786 = vsel %vm774, %v730, %v630
        %v787 = vsel %vm775, %v731, %v631
        %v788 = vsel %vm776, %v732, %v632
        %v789 = vsel %vm777, %v733, %v633
        %v790 = vsel %vm774, %v762, %v634
        %v791 = vsel %vm775, %v763, %v635
        %v792 = vsel %vm776, %v764, %v636
        %v793 = vsel %vm777, %v765, %v637
        %s794 = sld [smem:[#allocation8 + $0x100]]
        %v795 = vstv %s794
        %v796 = vmul.f32 %v795, %v421
        %v797 = vmul.f32 %v795, %v422
        %v798 = vmul.f32 %v795, %v423
        %v799 = vmul.f32 %v795, %v424
        %s800 = sld [smem:[#allocation8 + $0x101]]
        %v801 = vstv %s800
        %v802 = vmul.f32 %v801, %v447
        %v803 = vmul.f32 %v801, %v448
        %v804 = vmul.f32 %v801, %v449
        %v805 = vmul.f32 %v801, %v450
        %v806 = vadd.f32 %v796, %v802
        %v807 = vadd.f32 %v797, %v803
        %v808 = vadd.f32 %v798, %v804
        %v809 = vadd.f32 %v799, %v805
        %s810 = sld [smem:[#allocation8 + $0x102]]
        %v811 = vstv %s810
        %v812 = vmul.f32 %v811, %v473
        %v813 = vmul.f32 %v811, %v474
        %v814 = vmul.f32 %v811, %v475
        %v815 = vmul.f32 %v811, %v476
        %v816 = vadd.f32 %v806, %v812
        %v817 = vadd.f32 %v807, %v813
        %v818 = vadd.f32 %v808, %v814
        %v819 = vadd.f32 %v809, %v815
        %s820 = sld [smem:[#allocation8 + $0x103]]
        %v821 = vstv %s820
        %v822 = vadd.f32 %v816, %v821
        %v823 = vadd.f32 %v817, %v821
        %v824 = vadd.f32 %v818, %v821
        %v825 = vadd.f32 %v819, %v821
        %s826 = sld [smem:[#allocation8 + $0x104]]
        %v827 = vstv %s826
        %v828 = vmul.f32 %v827, %v421
        %v829 = vmul.f32 %v827, %v422
        %v830 = vmul.f32 %v827, %v423
        %v831 = vmul.f32 %v827, %v424
        %s832 = sld [smem:[#allocation8 + $0x105]]
        %v833 = vstv %s832
        %v834 = vmul.f32 %v833, %v447
        %v835 = vmul.f32 %v833, %v448
        %v836 = vmul.f32 %v833, %v449
        %v837 = vmul.f32 %v833, %v450
        %v838 = vadd.f32 %v828, %v834
        %v839 = vadd.f32 %v829, %v835
        %v840 = vadd.f32 %v830, %v836
        %v841 = vadd.f32 %v831, %v837
        %s842 = sld [smem:[#allocation8 + $0x106]]
        %v843 = vstv %s842
        %v844 = vmul.f32 %v843, %v473
        %v845 = vmul.f32 %v843, %v474
        %v846 = vmul.f32 %v843, %v475
        %v847 = vmul.f32 %v843, %v476
        %v848 = vadd.f32 %v838, %v844
        %v849 = vadd.f32 %v839, %v845
        %v850 = vadd.f32 %v840, %v846
        %v851 = vadd.f32 %v841, %v847
        %s852 = sld [smem:[#allocation8 + $0x107]]
        %v853 = vstv %s852
        %v854 = vadd.f32 %v848, %v853
        %v855 = vadd.f32 %v849, %v853
        %v856 = vadd.f32 %v850, %v853
        %v857 = vadd.f32 %v851, %v853
        %s858 = sld [smem:[#allocation8 + $0x108]]
        %v859 = vstv %s858
        %v860 = vmul.f32 %v859, %v421
        %v861 = vmul.f32 %v859, %v422
        %v862 = vmul.f32 %v859, %v423
        %v863 = vmul.f32 %v859, %v424
        %s864 = sld [smem:[#allocation8 + $0x109]]
        %v865 = vstv %s864
        %v866 = vmul.f32 %v865, %v447
        %v867 = vmul.f32 %v865, %v448
        %v868 = vmul.f32 %v865, %v449
        %v869 = vmul.f32 %v865, %v450
        %v870 = vadd.f32 %v860, %v866
        %v871 = vadd.f32 %v861, %v867
        %v872 = vadd.f32 %v862, %v868
        %v873 = vadd.f32 %v863, %v869
        %s874 = sld [smem:[#allocation8 + $0x10a]]
        %v875 = vstv %s874
        %v876 = vmul.f32 %v875, %v473
        %v877 = vmul.f32 %v875, %v474
        %v878 = vmul.f32 %v875, %v475
        %v879 = vmul.f32 %v875, %v476
        %v880 = vadd.f32 %v870, %v876
        %v881 = vadd.f32 %v871, %v877
        %v882 = vadd.f32 %v872, %v878
        %v883 = vadd.f32 %v873, %v879
        %s884 = sld [smem:[#allocation8 + $0x10b]]
        %v885 = vstv %s884
        %v886 = vadd.f32 %v880, %v885
        %v887 = vadd.f32 %v881, %v885
        %v888 = vadd.f32 %v882, %v885
        %v889 = vadd.f32 %v883, %v885
        %s890 = sld [smem:[#allocation8 + $0x10c]]
        %v891 = vstv %s890
        %v892 = vmul.f32 %v891, %v421
        %v893 = vmul.f32 %v891, %v422
        %v894 = vmul.f32 %v891, %v423
        %v895 = vmul.f32 %v891, %v424
        %s896 = sld [smem:[#allocation8 + $0x10d]]
        %v897 = vstv %s896
        %v898 = vmul.f32 %v897, %v447
        %v899 = vmul.f32 %v897, %v448
        %v900 = vmul.f32 %v897, %v449
        %v901 = vmul.f32 %v897, %v450
        %v902 = vadd.f32 %v892, %v898
        %v903 = vadd.f32 %v893, %v899
        %v904 = vadd.f32 %v894, %v900
        %v905 = vadd.f32 %v895, %v901
        %s906 = sld [smem:[#allocation8 + $0x10e]]
        %v907 = vstv %s906
        %v908 = vmul.f32 %v907, %v473
        %v909 = vmul.f32 %v907, %v474
        %v910 = vmul.f32 %v907, %v475
        %v911 = vmul.f32 %v907, %v476
        %v912 = vadd.f32 %v902, %v908
        %v913 = vadd.f32 %v903, %v909
        %v914 = vadd.f32 %v904, %v910
        %v915 = vadd.f32 %v905, %v911
        %s916 = sld [smem:[#allocation8 + $0x10f]]
        %v917 = vstv %s916
        %v918 = vadd.f32 %v912, %v917
        %v919 = vadd.f32 %v913, %v917
        %v920 = vadd.f32 %v914, %v917
        %v921 = vadd.f32 %v915, %v917
        %v922 = vshra.s32 %v482, 2
        %v923 = vshra.s32 %v483, 2
        %v924 = vshra.s32 %v484, 2
        %v925 = vshra.s32 %v485, 2
        %v926 = vand.u32 %v922, 1
        %v927 = vand.u32 %v923, 1
        %v928 = vand.u32 %v924, 1
        %v929 = vand.u32 %v925, 1
        %vm930 = vcmp.ne.s32.totalorder %v926, 0
        %vm931 = vcmp.ne.s32.totalorder %v927, 0
        %vm932 = vcmp.ne.s32.totalorder %v928, 0
        %vm933 = vcmp.ne.s32.totalorder %v929, 0
        %v934 = vsel %vm930, %v822, %v778
        %v935 = vsel %vm931, %v823, %v779
        %v936 = vsel %vm932, %v824, %v780
        %v937 = vsel %vm933, %v825, %v781
        %v938 = vsel %vm930, %v854, %v782
        %v939 = vsel %vm931, %v855, %v783
        %v940 = vsel %vm932, %v856, %v784
        %v941 = vsel %vm933, %v857, %v785
        %v942 = vsel %vm930, %v886, %v786
        %v943 = vsel %vm931, %v887, %v787
        %v944 = vsel %vm932, %v888, %v788
        %v945 = vsel %vm933, %v889, %v789
        %v946 = vsel %vm930, %v918, %v790
        %v947 = vsel %vm931, %v919, %v791
        %v948 = vsel %vm932, %v920, %v792
        %v949 = vsel %vm933, %v921, %v793
        %v950 = vadd.f32 %v946, 1e-10
        %v951 = vadd.f32 %v947, 1e-10
        %v952 = vadd.f32 %v948, 1e-10
        %v953 = vadd.f32 %v949, 1e-10
        %v954 = vrcp.pop %v950
        %v955 = vrcp.pop %v951
        %v956 = vrcp.pop %v952
        %v957 = vrcp.pop %v953
        %v958 = vmul.f32 %v934, %v954
        %v959 = vmul.f32 %v935, %v955
        %v960 = vmul.f32 %v936, %v956
        %v961 = vmul.f32 %v937, %v957
        %v962 = vmul.f32 %v938, %v954
        %v963 = vmul.f32 %v939, %v955
        %v964 = vmul.f32 %v940, %v956
        %v965 = vmul.f32 %v941, %v957
        %v966 = vmul.f32 %v942, %v954
        %v967 = vmul.f32 %v943, %v955
        %v968 = vmul.f32 %v944, %v956
        %v969 = vmul.f32 %v945, %v957
        %s970 = sld [smem:[#allocation6 + %s399]]
        %v971 = vstv %s970
        %v972 = vmul.f32 %v971, %v958
        %v973 = vmul.f32 %v971, %v959
        %v974 = vmul.f32 %v971, %v960
        %v975 = vmul.f32 %v971, %v961
        %s976 = sld [smem:[#allocation6 + %s403]]
        %v977 = vstv %s976
        %v978 = vmul.f32 %v977, %v962
        %v979 = vmul.f32 %v977, %v963
        %v980 = vmul.f32 %v977, %v964
        %v981 = vmul.f32 %v977, %v965
        %v982 = vadd.f32 %v972, %v978
        %v983 = vadd.f32 %v973, %v979
        %v984 = vadd.f32 %v974, %v980
        %v985 = vadd.f32 %v975, %v981
        %s986 = sld [smem:[#allocation6 + %s414]]
        %v987 = vstv %s986
        %v988 = vmul.f32 %v987, %v966
        %v989 = vmul.f32 %v987, %v967
        %v990 = vmul.f32 %v987, %v968
        %v991 = vmul.f32 %v987, %v969
        %v992 = vadd.f32 %v982, %v988
        %v993 = vadd.f32 %v983, %v989
        %v994 = vadd.f32 %v984, %v990
        %v995 = vadd.f32 %v985, %v991
        %s996 = sld [smem:[#allocation6 + %s425]]
        %v997 = vstv %s996
        %v998 = vmul.f32 %v997, %v958
        %v999 = vmul.f32 %v997, %v959
        %v1000 = vmul.f32 %v997, %v960
        %v1001 = vmul.f32 %v997, %v961
        %s1002 = sld [smem:[#allocation6 + %s429]]
        %v1003 = vstv %s1002
        %v1004 = vmul.f32 %v1003, %v962
        %v1005 = vmul.f32 %v1003, %v963
        %v1006 = vmul.f32 %v1003, %v964
        %v1007 = vmul.f32 %v1003, %v965
        %v1008 = vadd.f32 %v998, %v1004
        %v1009 = vadd.f32 %v999, %v1005
        %v1010 = vadd.f32 %v1000, %v1006
        %v1011 = vadd.f32 %v1001, %v1007
        %s1012 = sld [smem:[#allocation6 + %s440]]
        %v1013 = vstv %s1012
        %v1014 = vmul.f32 %v1013, %v966
        %v1015 = vmul.f32 %v1013, %v967
        %v1016 = vmul.f32 %v1013, %v968
        %v1017 = vmul.f32 %v1013, %v969
        %v1018 = vadd.f32 %v1008, %v1014
        %v1019 = vadd.f32 %v1009, %v1015
        %v1020 = vadd.f32 %v1010, %v1016
        %v1021 = vadd.f32 %v1011, %v1017
        %s1022 = sld [smem:[#allocation6 + %s451]]
        %v1023 = vstv %s1022
        %v1024 = vmul.f32 %v1023, %v958
        %v1025 = vmul.f32 %v1023, %v959
        %v1026 = vmul.f32 %v1023, %v960
        %v1027 = vmul.f32 %v1023, %v961
        %s1028 = sld [smem:[#allocation6 + %s455]]
        %v1029 = vstv %s1028
        %v1030 = vmul.f32 %v1029, %v962
        %v1031 = vmul.f32 %v1029, %v963
        %v1032 = vmul.f32 %v1029, %v964
        %v1033 = vmul.f32 %v1029, %v965
        %v1034 = vadd.f32 %v1024, %v1030
        %v1035 = vadd.f32 %v1025, %v1031
        %v1036 = vadd.f32 %v1026, %v1032
        %v1037 = vadd.f32 %v1027, %v1033
        %s1038 = sld [smem:[#allocation6 + %s466]]
        %v1039 = vstv %s1038
        %v1040 = vmul.f32 %v1039, %v966
        %v1041 = vmul.f32 %v1039, %v967
        %v1042 = vmul.f32 %v1039, %v968
        %v1043 = vmul.f32 %v1039, %v969
        %v1044 = vadd.f32 %v1034, %v1040
        %v1045 = vadd.f32 %v1035, %v1041
        %v1046 = vadd.f32 %v1036, %v1042
        %v1047 = vadd.f32 %v1037, %v1043
        %v1048 = vadd.f32 %v1044, 1e-10
        %v1049 = vadd.f32 %v1045, 1e-10
        %v1050 = vadd.f32 %v1046, 1e-10
        %v1051 = vadd.f32 %v1047, 1e-10
        %v1052 = vrcp.pop %v1048
        %v1053 = vrcp.pop %v1049
        %v1054 = vrcp.pop %v1050
        %v1055 = vrcp.pop %v1051
        %v1056 = vmul.f32 %v992, %v1052
        %v1057 = vmul.f32 %v993, %v1053
        %v1058 = vmul.f32 %v994, %v1054
        %v1059 = vmul.f32 %v995, %v1055
        %v1060 = vmul.f32 %v1018, %v1052
        %v1061 = vmul.f32 %v1019, %v1053
        %v1062 = vmul.f32 %v1020, %v1054
        %v1063 = vmul.f32 %v1021, %v1055
        %v1064 = vmax.f32 %v1056, 0.0
        %v1065 = vmax.f32 %v1057, 0.0
        %v1066 = vmax.f32 %v1058, 0.0
        %v1067 = vmax.f32 %v1059, 0.0
        %v1068 = vmin.f32 %v1064, 15.0
        %v1069 = vmin.f32 %v1065, 15.0
        %v1070 = vmin.f32 %v1066, 15.0
        %v1071 = vmin.f32 %v1067, 15.0
        %v1072 = vcvt.f32.s32.to.zero.pseudo %v1068
        %v1073 = vcvt.f32.s32.to.zero.pseudo %v1069
        %v1074 = vcvt.f32.s32.to.zero.pseudo %v1070
        %v1075 = vcvt.f32.s32.to.zero.pseudo %v1071
        %v1076 = vmax.f32 %v1060, 0.0
        %v1077 = vmax.f32 %v1061, 0.0
        %v1078 = vmax.f32 %v1062, 0.0
        %v1079 = vmax.f32 %v1063, 0.0
        %v1080 = vmin.f32 %v1076, 15.0
        %v1081 = vmin.f32 %v1077, 15.0
        %v1082 = vmin.f32 %v1078, 15.0
        %v1083 = vmin.f32 %v1079, 15.0
        %v1084 = vcvt.f32.s32.to.zero.pseudo %v1080
        %v1085 = vcvt.f32.s32.to.zero.pseudo %v1081
        %v1086 = vcvt.f32.s32.to.zero.pseudo %v1082
        %v1087 = vcvt.f32.s32.to.zero.pseudo %v1083
        %v1088 = vmul.u32 %v1084, 16
        %v1089 = vmul.u32 %v1085, 16
        %v1090 = vmul.u32 %v1086, 16
        %v1091 = vmul.u32 %v1087, 16
        %v1092 = vadd.s32 %v1088, %v1072
        %v1093 = vadd.s32 %v1089, %v1073
        %v1094 = vadd.s32 %v1090, %v1074
        %v1095 = vadd.s32 %v1091, %v1075
        %1096 = vst [vmem:[%s366] sm:$0xff] %v1092
        %1097 = vst [vmem:[%s366 + $0x8] sm:$0xff] %v1093
        %1098 = vst [vmem:[%s366 + $0x10] sm:$0xff] %v1094
        %1099 = vst [vmem:[%s366 + $0x18] sm:$0xff] %v1095
        %1100 = vst [vmem:[%s373] sm:$0xff] %v966
        %1101 = vst [vmem:[%s373 + $0x8] sm:$0xff] %v967
        %1102 = vst [vmem:[%s373 + $0x10] sm:$0xff] %v968
        %1103 = vst [vmem:[%s373 + $0x18] sm:$0xff] %v969
        %s1104 = sand.u32 %s173, 1
        %s1105 = scalar_lea.sflag [#allocation4], %s1104
        %s1106 = sand.u32 %s173, 1
        %s1107 = smul.addr %s1106, 32
        %s1108 = scalar_lea.vmem [#allocation12], %s1107
        %s1109 = sand.u32 %s201, 1
        %s1110 = scalar_lea.sflag [#allocation14], %s1109
        %s1111 = sand.u32 %s201, 1
        %s1112 = smul.addr %s1111, 32
        %s1113 = scalar_lea.vmem [#allocation13], %s1112
        // Predicated region
        $region61: #{tpu_custom_call.1} parent=39 // pred_check
          %p1114 = pneg %p183
        $region62: #{tpu_custom_call.1} parent=39 // pred_check_branch
          %1116 = sbr.rel (%p1114) target = $region64
        $region63: #{tpu_custom_call.1} parent=39 // pred_region
          %s1117 = smul.u32 4, %s37
          %s1119 = ssub.s32 512, 512
          %1120 = vsyncadd %s1105, %s1119
          %s1121 = smul.addr %s36, 4
          %s1122 = sadd.s32 %s1117, %s1121
          %s1123 = smul.addr %s1122, 128
          %s1124 = scalar_lea.hbm %s5, %s1123
          %s1125 = sshll.u32 %s1108, 4
          %s1126 = int_to_ptr.vmem [resolvable:$true] %s1125
          %1131 = dma.vmem_to_hbm [thread:$0]  %s1126, 512, %s1124, %s1105, 128, 128, 8
        $region64: #{tpu_custom_call.1} parent=39 // pred_fallthru
          _
        // Predicated region
        $region65: #{tpu_custom_call.1} parent=39 // pred_check
          %p1132 = pneg %p211
        $region66: #{tpu_custom_call.1} parent=39 // pred_check_branch
          %1134 = sbr.rel (%p1132) target = $region68
        $region67: #{tpu_custom_call.1} parent=39 // pred_region
          %s1135 = smul.u32 4, %s37
          %s1137 = ssub.s32 512, 512
          %1138 = vsyncadd %s1110, %s1137
          %s1139 = smul.addr %s36, 4
          %s1140 = sadd.s32 %s1135, %s1139
          %s1141 = smul.addr %s1140, 128
          %s1142 = scalar_lea.hbm %s6, %s1141
          %s1143 = sshll.u32 %s1113, 4
          %s1144 = int_to_ptr.vmem [resolvable:$true] %s1143
          %1149 = dma.vmem_to_hbm [thread:$0]  %s1144, 512, %s1142, %s1110, 128, 128, 8
        $region68: #{tpu_custom_call.1} parent=39 // pred_fallthru
          _
      $region40: #{tpu_custom_call.1} parent=5 // pred_fallthru
        _
      %p1150 = scmp.le.s32.totalorder 2, %s27
      // Predicated region
      $region69: #{tpu_custom_call.1} parent=5 // pred_check
        %p1151 = pneg %p1150
      $region70: #{tpu_custom_call.1} parent=5 // pred_check_branch
        %1153 = sbr.rel (%p1151) target = $region72
      $region71: #{tpu_custom_call.1} parent=5 // pred_region
        %s1154 = ssub.s32 %s27, 2
        // Predicated region
        $region73: #{tpu_custom_call.1} parent=71 // pred_check
          %p1155 = pneg %p189
        $region74: #{tpu_custom_call.1} parent=71 // pred_check_branch
          %1157 = sbr.rel (%p1155) target = $region76
        $region75: #{tpu_custom_call.1} parent=71 // pred_region
          %s1158 = sand.u32 %s174, 1
          %s1159 = scalar_lea.sflag [#allocation4], %s1158
          %s1160 = sand.u32 %s174, 1
          %s1161 = smul.addr %s1160, 32
          %s1162 = scalar_lea.vmem [#allocation12], %s1161
          %1163 = dma.done %s1159, 512
        $region76: #{tpu_custom_call.1} parent=71 // pred_fallthru
          _
        // Predicated region
        $region77: #{tpu_custom_call.1} parent=71 // pred_check
          %p1164 = pneg %p217
        $region78: #{tpu_custom_call.1} parent=71 // pred_check_branch
          %1166 = sbr.rel (%p1164) target = $region80
        $region79: #{tpu_custom_call.1} parent=71 // pred_region
          %s1167 = sand.u32 %s202, 1
          %s1168 = scalar_lea.sflag [#allocation14], %s1167
          %s1169 = sand.u32 %s202, 1
          %s1170 = smul.addr %s1169, 32
          %s1171 = scalar_lea.vmem [#allocation13], %s1170
          %1172 = dma.done %s1168, 512
        $region80: #{tpu_custom_call.1} parent=71 // pred_fallthru
          _
      $region72: #{tpu_custom_call.1} parent=5 // pred_fallthru
        _
    $region6: #{tpu_custom_call.1} parent=1 // loop_footer
      %s31 = sadd.s32 1, %s27
    $region7: #{tpu_custom_call.1} parent=1 // loop_footer_branch
      %26 = sbr.rel target = $region3
    $region8: #{tpu_custom_call.1} parent=1 // loop_exit
      _
    %1173 = vsyncpa [#allocation3], 1
    %s1174 = scalar_lea.sflag [#allocation3], 1
    %1175 = vsyncpa %s1174, 1
    %1176 = vsyncpa [#allocation11], 1
    %s1177 = scalar_lea.sflag [#allocation11], 1
    %1178 = vsyncpa %s1177, 1
    %1179 = vsyncpa [#allocation4], 1
    %s1180 = scalar_lea.sflag [#allocation4], 1
    %1181 = vsyncpa %s1180, 1
    %1182 = vsyncpa [#allocation14], 1
    %s1183 = scalar_lea.sflag [#allocation14], 1
    %1184 = vsyncpa %s1183, 1
    %1185 = vsyncpa [#allocation5], 1
    %s1186 = scalar_lea.sflag [#allocation5], 1
    %1187 = vsyncpa %s1186, 1
    %1188 = vsyncpa [#allocation7], 1

</llo_original>
